<compile_context>
chip_gen: v6e
topology: v6e:2x2x1
jax: 0.10.0
libtpu: 0.0.40
codegen_flags: <defaults>
</compile_context>

<pallas_src>
import functools

import jax
import jax.numpy as jnp
from jax import lax
from jax.experimental import pallas as pl
from jax.experimental.pallas import tpu as pltpu


def _round_up(v, m):
    return ((v + m - 1) // m) * m


def _reservoir_kernel(x_ref, w_in_ref, w_h_ref, b_ref,
                      states_ref, last_ref,
                      h_scratch, u_scratch,
                      *, t_real, leak, unroll):
    """One reservoir layer, one time tile per grid step.

    x_ref:      (tT, Np, Dp)  bf16  time-tile of the input sequence
    w_in_ref:   (Dp, Hp)      bf16  input weights (VMEM-resident across grid)
    w_h_ref:    (Hp, Hp)      bf16  recurrent weights (resident)
    b_ref:      (1, Hp)       f32   bias (resident)
    states_ref: (tT, Np, Hp)  bf16  hidden-state tile (output)
    last_ref:   (Np, Hp)      f32   final hidden state (output, resident)
    h_scratch:  (Np, Hp)      f32   recurrent state, persists across grid steps
    u_scratch:  (tT, Np, Hp)  f32   hoisted input projection for this tile
    """
    i = pl.program_id(0)
    t_tile, n_p, d_p = x_ref.shape
    h_p = w_h_ref.shape[1]

    @pl.when(i == 0)
    def _():
        h_scratch[...] = jnp.zeros_like(h_scratch)

    # ---- Hoisted input projection: one big MXU matmul for the whole tile ----
    x2d = x_ref[...].reshape(t_tile * n_p, d_p)                  # bf16
    u2d = jnp.dot(x2d, w_in_ref[...],
                  preferred_element_type=jnp.float32) + b_ref[...]
    u_scratch[...] = u2d.reshape(t_tile, n_p, h_p)

    w_h = w_h_ref[...]                                           # hoisted, bf16

    # ---- Serial recurrence over the time tile ----
    def step(t, carry):
        h_prev = h_scratch[...]                                  # f32
        pre = jnp.dot(h_prev.astype(jnp.bfloat16), w_h,
                      preferred_element_type=jnp.float32) + u_scratch[t]
        h_new = (1.0 - leak) * h_prev + leak * jnp.tanh(pre)
        # Mask time padding: past the real sequence length keep h unchanged.
        valid = (i * t_tile + t) < t_real
        h_new = jnp.where(valid, h_new, h_prev)
        h_scratch[...] = h_new
        states_ref[t] = h_new.astype(states_ref.dtype)
        return carry

    lax.fori_loop(0, t_tile, step, 0, unroll=unroll)
    last_ref[...] = h_scratch[...]


def _run_reservoir_layer(x_tm, w_in, w_h, b, *, t_real, t_tile, leak):
    """x_tm: (T_pad, Np, Dp) bf16 time-major padded input.

    Returns (states_tm (T_pad, Np, Hp) bf16, last (Np, Hp) f32).
    """
    t_pad, n_p, d_p = x_tm.shape
    h_p = w_h.shape[0]
    n_tiles = t_pad // t_tile

    kernel = functools.partial(_reservoir_kernel, t_real=t_real, leak=leak,
                               unroll=min(8, t_tile))

    states_tm, last = pl.pallas_call(
        kernel,
        out_shape=(jax.ShapeDtypeStruct((t_pad, n_p, h_p), jnp.bfloat16),
                   jax.ShapeDtypeStruct((n_p, h_p), jnp.float32)),
        grid_spec=pltpu.PrefetchScalarGridSpec(
            num_scalar_prefetch=0,
            grid=(n_tiles,),
            in_specs=[
                pl.BlockSpec((t_tile, n_p, d_p), lambda i: (i, 0, 0)),
                pl.BlockSpec((d_p, h_p), lambda i: (0, 0)),
                pl.BlockSpec((h_p, h_p), lambda i: (0, 0)),
                pl.BlockSpec((1, h_p), lambda i: (0, 0)),
            ],
            out_specs=(
                pl.BlockSpec((t_tile, n_p, h_p), lambda i: (i, 0, 0)),
                pl.BlockSpec((n_p, h_p), lambda i: (0, 0)),
            ),
            scratch_shapes=[
                pltpu.VMEM((n_p, h_p), jnp.float32),          # carried h
                pltpu.VMEM((t_tile, n_p, h_p), jnp.float32),  # hoisted U tile
            ],
        ),
        compiler_params=pltpu.CompilerParams(
            dimension_semantics=("arbitrary",),   # serial recurrence in time
            vmem_limit_bytes=48 * 1024 * 1024,    # safe on v5e/v6e/v7x
        ),
    )(x_tm, w_in, w_h, b)
    return states_tm, last


def _make_reservoir_params(key, in_size, n_units, d_pad, h_pad,
                           input_scaling=1.0, rho=0.9, bias_scaling=0.1):
    """Deterministic synthetic reservoir weights, zero-padded to TPU tiles."""
    k1, k2, k3 = jax.random.split(key, 3)
    w_in = jax.random.uniform(k1, (in_size, n_units), minval=-1.0, maxval=1.0,
                              dtype=jnp.float32) * input_scaling
    w_h = jax.random.uniform(k2, (n_units, n_units), minval=-1.0, maxval=1.0,
                             dtype=jnp.float32)
    # Approximate spectral-radius rescaling (U[-1,1] entries -> ~sqrt(H/3)).
    w_h = w_h * (rho / jnp.sqrt(n_units / 3.0))
    b = jax.random.uniform(k3, (1, n_units), minval=-1.0, maxval=1.0,
                           dtype=jnp.float32) * bias_scaling

    # Zero padding keeps padded hidden lanes exactly 0 through the recurrence.
    w_in_p = jnp.zeros((d_pad, h_pad), jnp.float32).at[:in_size, :n_units].set(w_in)
    w_h_p = jnp.zeros((h_pad, h_pad), jnp.float32).at[:n_units, :n_units].set(w_h)
    b_p = jnp.zeros((1, h_pad), jnp.float32).at[:, :n_units].set(b)
    return (w_in_p.astype(jnp.bfloat16),
            w_h_p.astype(jnp.bfloat16),
            b_p)


class DeepResESN:
    """JAX/Pallas port of the PyTorch DeepResESN module (forward only)."""

    def __init__(self, in_size=1, concat=False, n_layers=1, n_units=100,
                 leak=0.9, key=None):
        self.in_size = in_size
        self.concat = concat
        self.n_layers = n_layers
        self.n_units = n_units
        self.leak = leak

        self.layers_units = self.first_layer_units = n_units
        if concat:
            self.layers_units = n_units // n_layers
            self.first_layer_units = self.layers_units + n_units % n_layers

        if key is None:
            key = jax.random.PRNGKey(0)
        keys = jax.random.split(key, n_layers)

        # Real (d, h) dims per layer.
        dims = [(self.in_size, self.first_layer_units)]
        h = self.first_layer_units
        for _ in range(1, n_layers):
            dims.append((h, self.layers_units))
            h = self.layers_units

        self.params = []
        self._h_reals = []
        self._d_pad0 = _round_up(dims[0][0], 128)
        for k, (d, hh) in zip(keys, dims):
            d_pad = _round_up(d, 128)   # == previous layer's h_pad for l > 0
            h_pad = _round_up(hh, 128)
            self.params.append(_make_reservoir_params(k, d, hh, d_pad, h_pad))
            self._h_reals.append(hh)

    def __call__(self, x):
        # x: (N, T, in_size)
        n, t, d = x.shape
        n_p = _round_up(max(n, 1), 16)          # bf16 sublane packing
        t_tile = min(t, 128)
        t_pad = _round_up(t, t_tile)

        # Single entry transpose + pad to time-major padded bf16.
        x_tm = jnp.transpose(x.astype(jnp.float32), (1, 0, 2))   # (T, N, D)
        x_tm = (jnp.zeros((t_pad, n_p, self._d_pad0), jnp.float32)
                .at[:t, :n, :d].set(x_tm)).astype(jnp.bfloat16)

        layer_states = []   # only materialized for concat=True
        layer_lasts = []
        cur = x_tm
        last_final = None
        h_final = self._h_reals[-1]
        for (w_in, w_h, b), h_real in zip(self.params, self._h_reals):
            states_tm, last = _run_reservoir_layer(
                cur, w_in, w_h, b, t_real=t, t_tile=t_tile, leak=self.leak)
            if self.concat:
                layer_states.append(states_tm[:t, :n, :h_real])
                layer_lasts.append(last[:n, :h_real])
            cur = states_tm          # padded, time-major, bf16 -> next layer
            last_final = last

        if self.concat:
            # Per-layer concatenation along the feature dim (the intended
            # semantics; the torch reference's raw .view on (L,N,T,H) would
            # scramble batch/time when taken literally).  Also supports
            # first_layer_units != layers_units.
            states_tm_cat = jnp.concatenate(
                [s.astype(jnp.float32) for s in layer_states], axis=-1)
            states = jnp.transpose(states_tm_cat, (1, 0, 2))      # (N, T, n_units)
            last_states = jnp.concatenate(layer_lasts, axis=-1)   # (N, n_units)
        else:
            states = jnp.transpose(
                cur[:t, :n, :h_final].astype(jnp.float32), (1, 0, 2))
            last_states = last_final[:n, :h_final]
        return states, last_states


if __name__ == "__main__":
    key = jax.random.PRNGKey(0)
    k_x, k_w = jax.random.split(key)

    # Small shapes consistent with the module's forward:
    # batch N=2, seq T=8, in_size=4, hidden n_units=32, 2 layers.
    N, T, IN_SIZE, N_UNITS, N_LAYERS = 2, 8, 4, 32, 2
    x = jax.random.normal(k_x, (N, T, IN_SIZE), dtype=jnp.float32)

    model = DeepResESN(in_size=IN_SIZE, concat=False, n_layers=N_LAYERS,
                       n_units=N_UNITS, key=k_w)
    states, last_states = model(x)
    jax.block_until_ready((states, last_states))

    assert states.shape == (N, T, N_UNITS), states.shape
    assert last_states.shape == (N, N_UNITS), last_states.shape
    assert bool(jnp.all(jnp.isfinite(states)))
    assert bool(jnp.all(jnp.isfinite(last_states)))
    # states are stored in bf16; last_states in f32 -> loose tolerance.
    assert bool(jnp.allclose(states[:, -1, :], last_states, atol=3e-2, rtol=3e-2))

    # Exercise the concat=True path (per-layer feature concatenation).
    model_c = DeepResESN(in_size=IN_SIZE, concat=True, n_layers=N_LAYERS,
                         n_units=N_UNITS, key=k_w)
    states_c, last_c = model_c(x)
    jax.block_until_ready((states_c, last_c))
    assert states_c.shape == (N, T, N_UNITS), states_c.shape
    assert last_c.shape == (N, N_UNITS), last_c.shape
    assert bool(jnp.all(jnp.isfinite(states_c)))

    print("KERNEL_OK")
</pallas_src>

<mosaic_0001>
module attributes {stable_mosaic.version = 11 : i64} {
  func.func @_reservoir_kernel(%arg0: i32, %arg1: memref<8x16x128xbf16, #tpu.memory_space<vmem>>, %arg2: memref<128x128xbf16, #tpu.memory_space<vmem>>, %arg3: memref<128x128xbf16, #tpu.memory_space<vmem>>, %arg4: memref<1x128xf32, #tpu.memory_space<vmem>>, %arg5: memref<8x16x128xbf16, #tpu.memory_space<vmem>>, %arg6: memref<16x128xf32, #tpu.memory_space<vmem>>, %arg7: memref<16x128xf32, #tpu.memory_space<vmem>>, %arg8: memref<8x16x128xf32, #tpu.memory_space<vmem>>) attributes {dimension_semantics = [#tpu.dimension_semantics<arbitrary>], iteration_bounds = array<i64: 1>, scalar_prefetch = 0 : i64, scratch_operands = 2 : i64, tpu.core_type = #tpu.core_type<tc>, window_params = [{transform_indices = @transform_0, window_bounds = array<i64: 8, 16, 128>}, {pipeline_mode = #tpu.pipeline_mode<synchronous>, transform_indices = @transform_1, window_bounds = array<i64: 128, 128>}, {pipeline_mode = #tpu.pipeline_mode<synchronous>, transform_indices = @transform_2, window_bounds = array<i64: 128, 128>}, {pipeline_mode = #tpu.pipeline_mode<synchronous>, transform_indices = @transform_3, window_bounds = array<i64: 1, 128>}, {transform_indices = @transform_4, window_bounds = array<i64: 8, 16, 128>}, {pipeline_mode = #tpu.pipeline_mode<synchronous>, transform_indices = @transform_5, window_bounds = array<i64: 16, 128>}]} {
    %c0_i32 = arith.constant 0 : i32
    %0 = arith.cmpi eq, %arg0, %c0_i32 : i32
    %1 = arith.extui %0 : i1 to i32
    %c0_i32_0 = arith.constant 0 : i32
    %2 = arith.cmpi ne, %1, %c0_i32_0 : i32
    scf.if %2 {
      %cst_121 = arith.constant 0.000000e+00 : f32
      %199 = vector.broadcast %cst_121 : f32 to vector<16x128xf32>
      %c0_122 = arith.constant 0 : index
      %c0_123 = arith.constant 0 : index
      %200 = vector.load %arg7[%c0_122, %c0_123] : memref<16x128xf32, #tpu.memory_space<vmem>>, vector<16x128xf32>
      tpu.vector_store %arg7[%c0_122, %c0_123], %199 {strides = array<i32>} : memref<16x128xf32, #tpu.memory_space<vmem>>, vector<16x128xf32>,
    } else {
    }
    %c0 = arith.constant 0 : index
    %c0_1 = arith.constant 0 : index
    %c0_2 = arith.constant 0 : index
    %3 = vector.load %arg1[%c0, %c0_1, %c0_2] : memref<8x16x128xbf16, #tpu.memory_space<vmem>>, vector<8x16x128xbf16>
    %4 = vector.shape_cast %3 : vector<8x16x128xbf16> to vector<128x128xbf16>
    %c0_3 = arith.constant 0 : index
    %c0_4 = arith.constant 0 : index
    %5 = vector.load %arg2[%c0_3, %c0_4] : memref<128x128xbf16, #tpu.memory_space<vmem>>, vector<128x128xbf16>
    %cst = arith.constant dense<0.000000e+00> : vector<128x128xf32>
    %6 = tpu.matmul %4, %5, %cst {dimension_numbers = #tpu.dot_dimension_numbers<[1], [0], [0], [1], [0, 0, 1, 1], [], []>} : vector<128x128xbf16>, vector<128x128xbf16>, vector<128x128xf32> -> vector<128x128xf32>
    %c0_5 = arith.constant 0 : index
    %c0_6 = arith.constant 0 : index
    %7 = vector.load %arg4[%c0_5, %c0_6] : memref<1x128xf32, #tpu.memory_space<vmem>>, vector<1x128xf32>
    %8 = vector.broadcast %7 : vector<1x128xf32> to vector<128x128xf32>
    %9 = arith.addf %6, %8 : vector<128x128xf32>
    %10 = vector.shape_cast %9 : vector<128x128xf32> to vector<8x16x128xf32>
    %c0_7 = arith.constant 0 : index
    %c0_8 = arith.constant 0 : index
    %c0_9 = arith.constant 0 : index
    %11 = vector.load %arg8[%c0_7, %c0_8, %c0_9] : memref<8x16x128xf32, #tpu.memory_space<vmem>>, vector<8x16x128xf32>
    tpu.vector_store %arg8[%c0_7, %c0_8, %c0_9], %10 {strides = array<i32>} : memref<8x16x128xf32, #tpu.memory_space<vmem>>, vector<8x16x128xf32>,
    %c0_10 = arith.constant 0 : index
    %c0_11 = arith.constant 0 : index
    %12 = vector.load %arg3[%c0_10, %c0_11] : memref<128x128xbf16, #tpu.memory_space<vmem>>, vector<128x128xbf16>
    %c0_i32_12 = arith.constant 0 : i32
    %c0_13 = arith.constant 0 : index
    %c0_14 = arith.constant 0 : index
    %13 = vector.load %arg7[%c0_13, %c0_14] : memref<16x128xf32, #tpu.memory_space<vmem>>, vector<16x128xf32>
    %14 = arith.truncf %13 : vector<16x128xf32> to vector<16x128xbf16>
    %cst_15 = arith.constant dense<0.000000e+00> : vector<16x128xf32>
    %15 = tpu.matmul %14, %12, %cst_15 {dimension_numbers = #tpu.dot_dimension_numbers<[1], [0], [0], [1], [0, 0, 1, 1], [], []>} : vector<16x128xbf16>, vector<128x128xbf16>, vector<16x128xf32> -> vector<16x128xf32>
    %16 = arith.index_cast %c0_i32_12 : i32 to index
    %c0_16 = arith.constant 0 : index
    %c0_17 = arith.constant 0 : index
    %17 = vector.load %arg8[%16, %c0_16, %c0_17] : memref<8x16x128xf32, #tpu.memory_space<vmem>>, vector<1x16x128xf32>
    %18 = vector.shape_cast %17 : vector<1x16x128xf32> to vector<16x128xf32>
    %19 = arith.addf %15, %18 : vector<16x128xf32>
    %cst_18 = arith.constant 1.000000e-01 : f32
    %20 = vector.broadcast %cst_18 : f32 to vector<16x128xf32>
    %21 = arith.mulf %20, %13 : vector<16x128xf32>
    %22 = math.tanh %19 : vector<16x128xf32>
    %cst_19 = arith.constant 0.899999976 : f32
    %23 = vector.broadcast %cst_19 : f32 to vector<16x128xf32>
    %24 = arith.mulf %23, %22 : vector<16x128xf32>
    %25 = arith.addf %21, %24 : vector<16x128xf32>
    %c8_i32 = arith.constant 8 : i32
    %26 = arith.muli %arg0, %c8_i32 : i32
    %27 = arith.addi %26, %c0_i32_12 : i32
    %c8_i32_20 = arith.constant 8 : i32
    %28 = arith.cmpi slt, %27, %c8_i32_20 : i32
    %29 = arith.select %28, %25, %13 : vector<16x128xf32>
    %c0_21 = arith.constant 0 : index
    %c0_22 = arith.constant 0 : index
    %30 = vector.load %arg7[%c0_21, %c0_22] : memref<16x128xf32, #tpu.memory_space<vmem>>, vector<16x128xf32>
    tpu.vector_store %arg7[%c0_21, %c0_22], %29 {strides = array<i32>} : memref<16x128xf32, #tpu.memory_space<vmem>>, vector<16x128xf32>,
    %31 = arith.truncf %29 : vector<16x128xf32> to vector<16x128xbf16>
    %32 = arith.index_cast %c0_i32_12 : i32 to index
    %c0_23 = arith.constant 0 : index
    %c0_24 = arith.constant 0 : index
    %33 = vector.load %arg5[%32, %c0_23, %c0_24] : memref<8x16x128xbf16, #tpu.memory_space<vmem>>, vector<1x16x128xbf16>
    %34 = vector.shape_cast %33 : vector<1x16x128xbf16> to vector<16x128xbf16>
    %35 = vector.shape_cast %31 : vector<16x128xbf16> to vector<1x16x128xbf16>
    tpu.vector_store %arg5[%32, %c0_23, %c0_24], %35 {strides = array<i32>} : memref<8x16x128xbf16, #tpu.memory_space<vmem>>, vector<1x16x128xbf16>,
    %c1_i32 = arith.constant 1 : i32
    %c0_25 = arith.constant 0 : index
    %c0_26 = arith.constant 0 : index
    %36 = vector.load %arg7[%c0_25, %c0_26] : memref<16x128xf32, #tpu.memory_space<vmem>>, vector<16x128xf32>
    %37 = arith.truncf %36 : vector<16x128xf32> to vector<16x128xbf16>
    %cst_27 = arith.constant dense<0.000000e+00> : vector<16x128xf32>
    %38 = tpu.matmul %37, %12, %cst_27 {dimension_numbers = #tpu.dot_dimension_numbers<[1], [0], [0], [1], [0, 0, 1, 1], [], []>} : vector<16x128xbf16>, vector<128x128xbf16>, vector<16x128xf32> -> vector<16x128xf32>
    %39 = arith.index_cast %c1_i32 : i32 to index
    %c0_28 = arith.constant 0 : index
    %c0_29 = arith.constant 0 : index
    %40 = vector.load %arg8[%39, %c0_28, %c0_29] : memref<8x16x128xf32, #tpu.memory_space<vmem>>, vector<1x16x128xf32>
    %41 = vector.shape_cast %40 : vector<1x16x128xf32> to vector<16x128xf32>
    %42 = arith.addf %38, %41 : vector<16x128xf32>
    %cst_30 = arith.constant 1.000000e-01 : f32
    %43 = vector.broadcast %cst_30 : f32 to vector<16x128xf32>
    %44 = arith.mulf %43, %36 : vector<16x128xf32>
    %45 = math.tanh %42 : vector<16x128xf32>
    %cst_31 = arith.constant 0.899999976 : f32
    %46 = vector.broadcast %cst_31 : f32 to vector<16x128xf32>
    %47 = arith.mulf %46, %45 : vector<16x128xf32>
    %48 = arith.addf %44, %47 : vector<16x128xf32>
    %c8_i32_32 = arith.constant 8 : i32
    %49 = arith.muli %arg0, %c8_i32_32 : i32
    %50 = arith.addi %49, %c1_i32 : i32
    %c8_i32_33 = arith.constant 8 : i32
    %51 = arith.cmpi slt, %50, %c8_i32_33 : i32
    %52 = arith.select %51, %48, %36 : vector<16x128xf32>
    %c0_34 = arith.constant 0 : index
    %c0_35 = arith.constant 0 : index
    %53 = vector.load %arg7[%c0_34, %c0_35] : memref<16x128xf32, #tpu.memory_space<vmem>>, vector<16x128xf32>
    tpu.vector_store %arg7[%c0_34, %c0_35], %52 {strides = array<i32>} : memref<16x128xf32, #tpu.memory_space<vmem>>, vector<16x128xf32>,
    %54 = arith.truncf %52 : vector<16x128xf32> to vector<16x128xbf16>
    %55 = arith.index_cast %c1_i32 : i32 to index
    %c0_36 = arith.constant 0 : index
    %c0_37 = arith.constant 0 : index
    %56 = vector.load %arg5[%55, %c0_36, %c0_37] : memref<8x16x128xbf16, #tpu.memory_space<vmem>>, vector<1x16x128xbf16>
    %57 = vector.shape_cast %56 : vector<1x16x128xbf16> to vector<16x128xbf16>
    %58 = vector.shape_cast %54 : vector<16x128xbf16> to vector<1x16x128xbf16>
    tpu.vector_store %arg5[%55, %c0_36, %c0_37], %58 {strides = array<i32>} : memref<8x16x128xbf16, #tpu.memory_space<vmem>>, vector<1x16x128xbf16>,
    %c2_i32 = arith.constant 2 : i32
    %c0_38 = arith.constant 0 : index
    %c0_39 = arith.constant 0 : index
    %59 = vector.load %arg7[%c0_38, %c0_39] : memref<16x128xf32, #tpu.memory_space<vmem>>, vector<16x128xf32>
    %60 = arith.truncf %59 : vector<16x128xf32> to vector<16x128xbf16>
    %cst_40 = arith.constant dense<0.000000e+00> : vector<16x128xf32>
    %61 = tpu.matmul %60, %12, %cst_40 {dimension_numbers = #tpu.dot_dimension_numbers<[1], [0], [0], [1], [0, 0, 1, 1], [], []>} : vector<16x128xbf16>, vector<128x128xbf16>, vector<16x128xf32> -> vector<16x128xf32>
    %62 = arith.index_cast %c2_i32 : i32 to index
    %c0_41 = arith.constant 0 : index
    %c0_42 = arith.constant 0 : index
    %63 = vector.load %arg8[%62, %c0_41, %c0_42] : memref<8x16x128xf32, #tpu.memory_space<vmem>>, vector<1x16x128xf32>
    %64 = vector.shape_cast %63 : vector<1x16x128xf32> to vector<16x128xf32>
    %65 = arith.addf %61, %64 : vector<16x128xf32>
    %cst_43 = arith.constant 1.000000e-01 : f32
    %66 = vector.broadcast %cst_43 : f32 to vector<16x128xf32>
    %67 = arith.mulf %66, %59 : vector<16x128xf32>
    %68 = math.tanh %65 : vector<16x128xf32>
    %cst_44 = arith.constant 0.899999976 : f32
    %69 = vector.broadcast %cst_44 : f32 to vector<16x128xf32>
    %70 = arith.mulf %69, %68 : vector<16x128xf32>
    %71 = arith.addf %67, %70 : vector<16x128xf32>
    %c8_i32_45 = arith.constant 8 : i32
    %72 = arith.muli %arg0, %c8_i32_45 : i32
    %73 = arith.addi %72, %c2_i32 : i32
    %c8_i32_46 = arith.constant 8 : i32
    %74 = arith.cmpi slt, %73, %c8_i32_46 : i32
    %75 = arith.select %74, %71, %59 : vector<16x128xf32>
    %c0_47 = arith.constant 0 : index
    %c0_48 = arith.constant 0 : index
    %76 = vector.load %arg7[%c0_47, %c0_48] : memref<16x128xf32, #tpu.memory_space<vmem>>, vector<16x128xf32>
    tpu.vector_store %arg7[%c0_47, %c0_48], %75 {strides = array<i32>} : memref<16x128xf32, #tpu.memory_space<vmem>>, vector<16x128xf32>,
    %77 = arith.truncf %75 : vector<16x128xf32> to vector<16x128xbf16>
    %78 = arith.index_cast %c2_i32 : i32 to index
    %c0_49 = arith.constant 0 : index
    %c0_50 = arith.constant 0 : index
    %79 = vector.load %arg5[%78, %c0_49, %c0_50] : memref<8x16x128xbf16, #tpu.memory_space<vmem>>, vector<1x16x128xbf16>
    %80 = vector.shape_cast %79 : vector<1x16x128xbf16> to vector<16x128xbf16>
    %81 = vector.shape_cast %77 : vector<16x128xbf16> to vector<1x16x128xbf16>
    tpu.vector_store %arg5[%78, %c0_49, %c0_50], %81 {strides = array<i32>} : memref<8x16x128xbf16, #tpu.memory_space<vmem>>, vector<1x16x128xbf16>,
    %c3_i32 = arith.constant 3 : i32
    %c0_51 = arith.constant 0 : index
    %c0_52 = arith.constant 0 : index
    %82 = vector.load %arg7[%c0_51, %c0_52] : memref<16x128xf32, #tpu.memory_space<vmem>>, vector<16x128xf32>
    %83 = arith.truncf %82 : vector<16x128xf32> to vector<16x128xbf16>
    %cst_53 = arith.constant dense<0.000000e+00> : vector<16x128xf32>
    %84 = tpu.matmul %83, %12, %cst_53 {dimension_numbers = #tpu.dot_dimension_numbers<[1], [0], [0], [1], [0, 0, 1, 1], [], []>} : vector<16x128xbf16>, vector<128x128xbf16>, vector<16x128xf32> -> vector<16x128xf32>
    %85 = arith.index_cast %c3_i32 : i32 to index
    %c0_54 = arith.constant 0 : index
    %c0_55 = arith.constant 0 : index
    %86 = vector.load %arg8[%85, %c0_54, %c0_55] : memref<8x16x128xf32, #tpu.memory_space<vmem>>, vector<1x16x128xf32>
    %87 = vector.shape_cast %86 : vector<1x16x128xf32> to vector<16x128xf32>
    %88 = arith.addf %84, %87 : vector<16x128xf32>
    %cst_56 = arith.constant 1.000000e-01 : f32
    %89 = vector.broadcast %cst_56 : f32 to vector<16x128xf32>
    %90 = arith.mulf %89, %82 : vector<16x128xf32>
    %91 = math.tanh %88 : vector<16x128xf32>
    %cst_57 = arith.constant 0.899999976 : f32
    %92 = vector.broadcast %cst_57 : f32 to vector<16x128xf32>
    %93 = arith.mulf %92, %91 : vector<16x128xf32>
    %94 = arith.addf %90, %93 : vector<16x128xf32>
    %c8_i32_58 = arith.constant 8 : i32
    %95 = arith.muli %arg0, %c8_i32_58 : i32
    %96 = arith.addi %95, %c3_i32 : i32
    %c8_i32_59 = arith.constant 8 : i32
    %97 = arith.cmpi slt, %96, %c8_i32_59 : i32
    %98 = arith.select %97, %94, %82 : vector<16x128xf32>
    %c0_60 = arith.constant 0 : index
    %c0_61 = arith.constant 0 : index
    %99 = vector.load %arg7[%c0_60, %c0_61] : memref<16x128xf32, #tpu.memory_space<vmem>>, vector<16x128xf32>
    tpu.vector_store %arg7[%c0_60, %c0_61], %98 {strides = array<i32>} : memref<16x128xf32, #tpu.memory_space<vmem>>, vector<16x128xf32>,
    %100 = arith.truncf %98 : vector<16x128xf32> to vector<16x128xbf16>
    %101 = arith.index_cast %c3_i32 : i32 to index
    %c0_62 = arith.constant 0 : index
    %c0_63 = arith.constant 0 : index
    %102 = vector.load %arg5[%101, %c0_62, %c0_63] : memref<8x16x128xbf16, #tpu.memory_space<vmem>>, vector<1x16x128xbf16>
    %103 = vector.shape_cast %102 : vector<1x16x128xbf16> to vector<16x128xbf16>
    %104 = vector.shape_cast %100 : vector<16x128xbf16> to vector<1x16x128xbf16>
    tpu.vector_store %arg5[%101, %c0_62, %c0_63], %104 {strides = array<i32>} : memref<8x16x128xbf16, #tpu.memory_space<vmem>>, vector<1x16x128xbf16>,
    %c4_i32 = arith.constant 4 : i32
    %c0_64 = arith.constant 0 : index
    %c0_65 = arith.constant 0 : index
    %105 = vector.load %arg7[%c0_64, %c0_65] : memref<16x128xf32, #tpu.memory_space<vmem>>, vector<16x128xf32>
    %106 = arith.truncf %105 : vector<16x128xf32> to vector<16x128xbf16>
    %cst_66 = arith.constant dense<0.000000e+00> : vector<16x128xf32>
    %107 = tpu.matmul %106, %12, %cst_66 {dimension_numbers = #tpu.dot_dimension_numbers<[1], [0], [0], [1], [0, 0, 1, 1], [], []>} : vector<16x128xbf16>, vector<128x128xbf16>, vector<16x128xf32> -> vector<16x128xf32>
    %108 = arith.index_cast %c4_i32 : i32 to index
    %c0_67 = arith.constant 0 : index
    %c0_68 = arith.constant 0 : index
    %109 = vector.load %arg8[%108, %c0_67, %c0_68] : memref<8x16x128xf32, #tpu.memory_space<vmem>>, vector<1x16x128xf32>
    %110 = vector.shape_cast %109 : vector<1x16x128xf32> to vector<16x128xf32>
    %111 = arith.addf %107, %110 : vector<16x128xf32>
    %cst_69 = arith.constant 1.000000e-01 : f32
    %112 = vector.broadcast %cst_69 : f32 to vector<16x128xf32>
    %113 = arith.mulf %112, %105 : vector<16x128xf32>
    %114 = math.tanh %111 : vector<16x128xf32>
    %cst_70 = arith.constant 0.899999976 : f32
    %115 = vector.broadcast %cst_70 : f32 to vector<16x128xf32>
    %116 = arith.mulf %115, %114 : vector<16x128xf32>
    %117 = arith.addf %113, %116 : vector<16x128xf32>
    %c8_i32_71 = arith.constant 8 : i32
    %118 = arith.muli %arg0, %c8_i32_71 : i32
    %119 = arith.addi %118, %c4_i32 : i32
    %c8_i32_72 = arith.constant 8 : i32
    %120 = arith.cmpi slt, %119, %c8_i32_72 : i32
    %121 = arith.select %120, %117, %105 : vector<16x128xf32>
    %c0_73 = arith.constant 0 : index
    %c0_74 = arith.constant 0 : index
    %122 = vector.load %arg7[%c0_73, %c0_74] : memref<16x128xf32, #tpu.memory_space<vmem>>, vector<16x128xf32>
    tpu.vector_store %arg7[%c0_73, %c0_74], %121 {strides = array<i32>} : memref<16x128xf32, #tpu.memory_space<vmem>>, vector<16x128xf32>,
    %123 = arith.truncf %121 : vector<16x128xf32> to vector<16x128xbf16>
    %124 = arith.index_cast %c4_i32 : i32 to index
    %c0_75 = arith.constant 0 : index
    %c0_76 = arith.constant 0 : index
    %125 = vector.load %arg5[%124, %c0_75, %c0_76] : memref<8x16x128xbf16, #tpu.memory_space<vmem>>, vector<1x16x128xbf16>
    %126 = vector.shape_cast %125 : vector<1x16x128xbf16> to vector<16x128xbf16>
    %127 = vector.shape_cast %123 : vector<16x128xbf16> to vector<1x16x128xbf16>
    tpu.vector_store %arg5[%124, %c0_75, %c0_76], %127 {strides = array<i32>} : memref<8x16x128xbf16, #tpu.memory_space<vmem>>, vector<1x16x128xbf16>,
    %c5_i32 = arith.constant 5 : i32
    %c0_77 = arith.constant 0 : index
    %c0_78 = arith.constant 0 : index
    %128 = vector.load %arg7[%c0_77, %c0_78] : memref<16x128xf32, #tpu.memory_space<vmem>>, vector<16x128xf32>
    %129 = arith.truncf %128 : vector<16x128xf32> to vector<16x128xbf16>
    %cst_79 = arith.constant dense<0.000000e+00> : vector<16x128xf32>
    %130 = tpu.matmul %129, %12, %cst_79 {dimension_numbers = #tpu.dot_dimension_numbers<[1], [0], [0], [1], [0, 0, 1, 1], [], []>} : vector<16x128xbf16>, vector<128x128xbf16>, vector<16x128xf32> -> vector<16x128xf32>
    %131 = arith.index_cast %c5_i32 : i32 to index
    %c0_80 = arith.constant 0 : index
    %c0_81 = arith.constant 0 : index
    %132 = vector.load %arg8[%131, %c0_80, %c0_81] : memref<8x16x128xf32, #tpu.memory_space<vmem>>, vector<1x16x128xf32>
    %133 = vector.shape_cast %132 : vector<1x16x128xf32> to vector<16x128xf32>
    %134 = arith.addf %130, %133 : vector<16x128xf32>
    %cst_82 = arith.constant 1.000000e-01 : f32
    %135 = vector.broadcast %cst_82 : f32 to vector<16x128xf32>
    %136 = arith.mulf %135, %128 : vector<16x128xf32>
    %137 = math.tanh %134 : vector<16x128xf32>
    %cst_83 = arith.constant 0.899999976 : f32
    %138 = vector.broadcast %cst_83 : f32 to vector<16x128xf32>
    %139 = arith.mulf %138, %137 : vector<16x128xf32>
    %140 = arith.addf %136, %139 : vector<16x128xf32>
    %c8_i32_84 = arith.constant 8 : i32
    %141 = arith.muli %arg0, %c8_i32_84 : i32
    %142 = arith.addi %141, %c5_i32 : i32
    %c8_i32_85 = arith.constant 8 : i32
    %143 = arith.cmpi slt, %142, %c8_i32_85 : i32
    %144 = arith.select %143, %140, %128 : vector<16x128xf32>
    %c0_86 = arith.constant 0 : index
    %c0_87 = arith.constant 0 : index
    %145 = vector.load %arg7[%c0_86, %c0_87] : memref<16x128xf32, #tpu.memory_space<vmem>>, vector<16x128xf32>
    tpu.vector_store %arg7[%c0_86, %c0_87], %144 {strides = array<i32>} : memref<16x128xf32, #tpu.memory_space<vmem>>, vector<16x128xf32>,
    %146 = arith.truncf %144 : vector<16x128xf32> to vector<16x128xbf16>
    %147 = arith.index_cast %c5_i32 : i32 to index
    %c0_88 = arith.constant 0 : index
    %c0_89 = arith.constant 0 : index
    %148 = vector.load %arg5[%147, %c0_88, %c0_89] : memref<8x16x128xbf16, #tpu.memory_space<vmem>>, vector<1x16x128xbf16>
    %149 = vector.shape_cast %148 : vector<1x16x128xbf16> to vector<16x128xbf16>
    %150 = vector.shape_cast %146 : vector<16x128xbf16> to vector<1x16x128xbf16>
    tpu.vector_store %arg5[%147, %c0_88, %c0_89], %150 {strides = array<i32>} : memref<8x16x128xbf16, #tpu.memory_space<vmem>>, vector<1x16x128xbf16>,
    %c6_i32 = arith.constant 6 : i32
    %c0_90 = arith.constant 0 : index
    %c0_91 = arith.constant 0 : index
    %151 = vector.load %arg7[%c0_90, %c0_91] : memref<16x128xf32, #tpu.memory_space<vmem>>, vector<16x128xf32>
    %152 = arith.truncf %151 : vector<16x128xf32> to vector<16x128xbf16>
    %cst_92 = arith.constant dense<0.000000e+00> : vector<16x128xf32>
    %153 = tpu.matmul %152, %12, %cst_92 {dimension_numbers = #tpu.dot_dimension_numbers<[1], [0], [0], [1], [0, 0, 1, 1], [], []>} : vector<16x128xbf16>, vector<128x128xbf16>, vector<16x128xf32> -> vector<16x128xf32>
    %154 = arith.index_cast %c6_i32 : i32 to index
    %c0_93 = arith.constant 0 : index
    %c0_94 = arith.constant 0 : index
    %155 = vector.load %arg8[%154, %c0_93, %c0_94] : memref<8x16x128xf32, #tpu.memory_space<vmem>>, vector<1x16x128xf32>
    %156 = vector.shape_cast %155 : vector<1x16x128xf32> to vector<16x128xf32>
    %157 = arith.addf %153, %156 : vector<16x128xf32>
    %cst_95 = arith.constant 1.000000e-01 : f32
    %158 = vector.broadcast %cst_95 : f32 to vector<16x128xf32>
    %159 = arith.mulf %158, %151 : vector<16x128xf32>
    %160 = math.tanh %157 : vector<16x128xf32>
    %cst_96 = arith.constant 0.899999976 : f32
    %161 = vector.broadcast %cst_96 : f32 to vector<16x128xf32>
    %162 = arith.mulf %161, %160 : vector<16x128xf32>
    %163 = arith.addf %159, %162 : vector<16x128xf32>
    %c8_i32_97 = arith.constant 8 : i32
    %164 = arith.muli %arg0, %c8_i32_97 : i32
    %165 = arith.addi %164, %c6_i32 : i32
    %c8_i32_98 = arith.constant 8 : i32
    %166 = arith.cmpi slt, %165, %c8_i32_98 : i32
    %167 = arith.select %166, %163, %151 : vector<16x128xf32>
    %c0_99 = arith.constant 0 : index
    %c0_100 = arith.constant 0 : index
    %168 = vector.load %arg7[%c0_99, %c0_100] : memref<16x128xf32, #tpu.memory_space<vmem>>, vector<16x128xf32>
    tpu.vector_store %arg7[%c0_99, %c0_100], %167 {strides = array<i32>} : memref<16x128xf32, #tpu.memory_space<vmem>>, vector<16x128xf32>,
    %169 = arith.truncf %167 : vector<16x128xf32> to vector<16x128xbf16>
    %170 = arith.index_cast %c6_i32 : i32 to index
    %c0_101 = arith.constant 0 : index
    %c0_102 = arith.constant 0 : index
    %171 = vector.load %arg5[%170, %c0_101, %c0_102] : memref<8x16x128xbf16, #tpu.memory_space<vmem>>, vector<1x16x128xbf16>
    %172 = vector.shape_cast %171 : vector<1x16x128xbf16> to vector<16x128xbf16>
    %173 = vector.shape_cast %169 : vector<16x128xbf16> to vector<1x16x128xbf16>
    tpu.vector_store %arg5[%170, %c0_101, %c0_102], %173 {strides = array<i32>} : memref<8x16x128xbf16, #tpu.memory_space<vmem>>, vector<1x16x128xbf16>,
    %c7_i32 = arith.constant 7 : i32
    %c0_103 = arith.constant 0 : index
    %c0_104 = arith.constant 0 : index
    %174 = vector.load %arg7[%c0_103, %c0_104] : memref<16x128xf32, #tpu.memory_space<vmem>>, vector<16x128xf32>
    %175 = arith.truncf %174 : vector<16x128xf32> to vector<16x128xbf16>
    %cst_105 = arith.constant dense<0.000000e+00> : vector<16x128xf32>
    %176 = tpu.matmul %175, %12, %cst_105 {dimension_numbers = #tpu.dot_dimension_numbers<[1], [0], [0], [1], [0, 0, 1, 1], [], []>} : vector<16x128xbf16>, vector<128x128xbf16>, vector<16x128xf32> -> vector<16x128xf32>
    %177 = arith.index_cast %c7_i32 : i32 to index
    %c0_106 = arith.constant 0 : index
    %c0_107 = arith.constant 0 : index
    %178 = vector.load %arg8[%177, %c0_106, %c0_107] : memref<8x16x128xf32, #tpu.memory_space<vmem>>, vector<1x16x128xf32>
    %179 = vector.shape_cast %178 : vector<1x16x128xf32> to vector<16x128xf32>
    %180 = arith.addf %176, %179 : vector<16x128xf32>
    %cst_108 = arith.constant 1.000000e-01 : f32
    %181 = vector.broadcast %cst_108 : f32 to vector<16x128xf32>
    %182 = arith.mulf %181, %174 : vector<16x128xf32>
    %183 = math.tanh %180 : vector<16x128xf32>
    %cst_109 = arith.constant 0.899999976 : f32
    %184 = vector.broadcast %cst_109 : f32 to vector<16x128xf32>
    %185 = arith.mulf %184, %183 : vector<16x128xf32>
    %186 = arith.addf %182, %185 : vector<16x128xf32>
    %c8_i32_110 = arith.constant 8 : i32
    %187 = arith.muli %arg0, %c8_i32_110 : i32
    %188 = arith.addi %187, %c7_i32 : i32
    %c8_i32_111 = arith.constant 8 : i32
    %189 = arith.cmpi slt, %188, %c8_i32_111 : i32
    %190 = arith.select %189, %186, %174 : vector<16x128xf32>
    %c0_112 = arith.constant 0 : index
    %c0_113 = arith.constant 0 : index
    %191 = vector.load %arg7[%c0_112, %c0_113] : memref<16x128xf32, #tpu.memory_space<vmem>>, vector<16x128xf32>
    tpu.vector_store %arg7[%c0_112, %c0_113], %190 {strides = array<i32>} : memref<16x128xf32, #tpu.memory_space<vmem>>, vector<16x128xf32>,
    %192 = arith.truncf %190 : vector<16x128xf32> to vector<16x128xbf16>
    %193 = arith.index_cast %c7_i32 : i32 to index
    %c0_114 = arith.constant 0 : index
    %c0_115 = arith.constant 0 : index
    %194 = vector.load %arg5[%193, %c0_114, %c0_115] : memref<8x16x128xbf16, #tpu.memory_space<vmem>>, vector<1x16x128xbf16>
    %195 = vector.shape_cast %194 : vector<1x16x128xbf16> to vector<16x128xbf16>
    %196 = vector.shape_cast %192 : vector<16x128xbf16> to vector<1x16x128xbf16>
    tpu.vector_store %arg5[%193, %c0_114, %c0_115], %196 {strides = array<i32>} : memref<8x16x128xbf16, #tpu.memory_space<vmem>>, vector<1x16x128xbf16>,
    %c8_i32_116 = arith.constant 8 : i32
    %c0_117 = arith.constant 0 : index
    %c0_118 = arith.constant 0 : index
    %197 = vector.load %arg7[%c0_117, %c0_118] : memref<16x128xf32, #tpu.memory_space<vmem>>, vector<16x128xf32>
    %c0_119 = arith.constant 0 : index
    %c0_120 = arith.constant 0 : index
    %198 = vector.load %arg6[%c0_119, %c0_120] : memref<16x128xf32, #tpu.memory_space<vmem>>, vector<16x128xf32>
    tpu.vector_store %arg6[%c0_119, %c0_120], %197 {strides = array<i32>} : memref<16x128xf32, #tpu.memory_space<vmem>>, vector<16x128xf32>,
    return
  }
  func.func @transform_0(%arg0: i32) -> (i32, i32, i32) {
    %c0_i32 = arith.constant 0 : i32
    %c0_i32_0 = arith.constant 0 : i32
    %c0_i32_1 = arith.constant 0 : i32
    return %arg0, %c0_i32, %c0_i32_0 : i32, i32, i32
  }
  func.func @transform_1(%arg0: i32) -> (i32, i32) {
    %c0_i32 = arith.constant 0 : i32
    %c0_i32_0 = arith.constant 0 : i32
    %c0_i32_1 = arith.constant 0 : i32
    return %c0_i32, %c0_i32_0 : i32, i32
  }
  func.func @transform_2(%arg0: i32) -> (i32, i32) {
    %c0_i32 = arith.constant 0 : i32
    %c0_i32_0 = arith.constant 0 : i32
    %c0_i32_1 = arith.constant 0 : i32
    return %c0_i32, %c0_i32_0 : i32, i32
  }
  func.func @transform_3(%arg0: i32) -> (i32, i32) {
    %c0_i32 = arith.constant 0 : i32
    %c0_i32_0 = arith.constant 0 : i32
    %c0_i32_1 = arith.constant 0 : i32
    return %c0_i32, %c0_i32_0 : i32, i32
  }
  func.func @transform_4(%arg0: i32) -> (i32, i32, i32) {
    %c0_i32 = arith.constant 0 : i32
    %c0_i32_0 = arith.constant 0 : i32
    %c0_i32_1 = arith.constant 0 : i32
    return %arg0, %c0_i32, %c0_i32_0 : i32, i32, i32
  }
  func.func @transform_5(%arg0: i32) -> (i32, i32) {
    %c0_i32 = arith.constant 0 : i32
    %c0_i32_0 = arith.constant 0 : i32
    %c0_i32_1 = arith.constant 0 : i32
    return %c0_i32, %c0_i32_0 : i32, i32
  }
}

</mosaic_0001>

<llo_original>
// kernel: tpu_custom_call.1
$region0: #{tpu_custom_call.1}
  #allocation0 [shape = 'u32[]', space=smem, size = 0x4, offset = 0x4, fixed_abs, tag = 'smem constant byte address 0x4 - core index']
  #allocation1 [shape = 'u32[144,128]{1,0:T(1,128)}', space=vmem, size = 0x12000, scoped, tag = 'internal scratch']
  #allocation2 [shape = 'f32[16,128]{1,0:T(8,128)}', space=vmem, size = 0x2000, scoped, tag = 'scratch operand']
  #allocation3 [shape = 'f32[8,16,128]{2,1,0:T(8,128)}', space=vmem, size = 0x10000, scoped, tag = 'scratch operand']
  %s0 = inlined_call_operand.hbm [shape: bf16[8,16,128], index: 0, kind: input, shape index: {}]
  %s1 = inlined_call_operand.hbm [shape: bf16[128,128], index: 1, kind: input, shape index: {}]
  %s2 = inlined_call_operand.hbm [shape: bf16[128,128], index: 2, kind: input, shape index: {}]
  %s3 = inlined_call_operand.vmem [shape: f32[1,128], index: 3, kind: input, shape index: {}]
  %s4 = inlined_call_operand.hbm [shape: bf16[8,16,128], index: 4, kind: output, shape index: {0}]
  %s5 = inlined_call_operand.hbm [shape: f32[16,128], index: 5, kind: output, shape index: {1}]
  %6 = xla_tuple %s4, %s5
  %s7 = sld [smem:[#allocation0]]
  $region50: #{tpu_custom_call.1} parent=0
    _
  %s9 = ssub.s32 1, %s7
  %s10 = scalar_select 0, %s9, %s7
  $region1: #{tpu_custom_call.1} parent=0
    #allocation4 [shape = 'u8[32768]{0}', space=vmem, size = 0x8000, scoped, tag = 'input window, operand 0, single buffered']
    #allocation5 [shape = 's32[1]{0}', space=sflag, size = 0x4, scoped, tag = 'scoped memory for tpu_custom_call.1']
    #allocation6 [shape = 's32[1]{0}', space=sflag, size = 0x4, scoped, tag = 'scoped memory for tpu_custom_call.1']
    #allocation7 [shape = 'u8[32768]{0}', space=vmem, size = 0x8000, scoped, tag = 'input window, operand 1, single buffered']
    #allocation8 [shape = 's32[1]{0}', space=sflag, size = 0x4, scoped, tag = 'scoped memory for tpu_custom_call.1']
    #allocation9 [shape = 'u8[32768]{0}', space=vmem, size = 0x8000, scoped, tag = 'input window, operand 2, single buffered']
    #allocation10 [shape = 'u8[32768]{0}', space=vmem, size = 0x8000, scoped, tag = 'output window, operand 0, single buffered']
    #allocation11 [shape = 'u8[8192]{0}', space=vmem, size = 0x2000, scoped, tag = 'output window, operand 1, single buffered']
    #allocation12 [shape = 's32[1]{0}', space=sflag, size = 0x4, scoped, tag = 'scoped memory for tpu_custom_call.1']
    %11 = vsyncpa [#allocation5], 0
    %12 = vsyncpa [#allocation8], 0
    %13 = vsyncpa [#allocation6], 0
    %14 = vsyncpa [#allocation12], 0
    // Predicated region
    $region2: #{tpu_custom_call.1} parent=1 // pred_check
      _
    $region3: #{tpu_custom_call.1} parent=1 // pred_check_branch
      %16 = sbr.rel (0) target = $region5
    $region4: #{tpu_custom_call.1} parent=1 // pred_region
      %s18 = ssub.s32 1024, 1024
      %19 = vsyncadd [#allocation5], %s18
      %s20 = sshll.u32 [#allocation4], 4
      %s21 = int_to_ptr.vmem [resolvable:$true] %s20
      %26 = dma.hbm_to_vmem [thread:$0]  %s0, 1024, %s21, [#allocation5], 64, 64, 4
    $region5: #{tpu_custom_call.1} parent=1 // pred_fallthru
      _
    // Predicated region
    $region6: #{tpu_custom_call.1} parent=1 // pred_check
      _
    $region7: #{tpu_custom_call.1} parent=1 // pred_check_branch
      %28 = sbr.rel (0) target = $region9
    $region8: #{tpu_custom_call.1} parent=1 // pred_region
      %s30 = ssub.s32 1024, 1024
      %31 = vsyncadd [#allocation8], %s30
      %s32 = sshll.u32 [#allocation7], 4
      %s33 = int_to_ptr.vmem [resolvable:$true] %s32
      %38 = dma.hbm_to_vmem [thread:$0]  %s1, 1024, %s33, [#allocation8], 64, 64, 4
    $region9: #{tpu_custom_call.1} parent=1 // pred_fallthru
      _
    // Predicated region
    $region10: #{tpu_custom_call.1} parent=1 // pred_check
      _
    $region11: #{tpu_custom_call.1} parent=1 // pred_check_branch
      %40 = sbr.rel (0) target = $region13
    $region12: #{tpu_custom_call.1} parent=1 // pred_region
      %s42 = ssub.s32 1024, 1024
      %43 = vsyncadd [#allocation8], %s42
      %s44 = sshll.u32 [#allocation9], 4
      %s45 = int_to_ptr.vmem [resolvable:$true] %s44
      %50 = dma.hbm_to_vmem [thread:$0]  %s2, 1024, %s45, [#allocation8], 64, 64, 4
    $region13: #{tpu_custom_call.1} parent=1 // pred_fallthru
      _
    // Predicated region
    $region14: #{tpu_custom_call.1} parent=1 // pred_check
      _
    $region15: #{tpu_custom_call.1} parent=1 // pred_check_branch
      %52 = sbr.rel (0) target = $region17
    $region16: #{tpu_custom_call.1} parent=1 // pred_region
      _
    $region17: #{tpu_custom_call.1} parent=1 // pred_fallthru
      _
    // Predicated region
    $region18: #{tpu_custom_call.1} parent=1 // pred_check
      _
    $region19: #{tpu_custom_call.1} parent=1 // pred_check_branch
      %54 = sbr.rel (0) target = $region21
    $region20: #{tpu_custom_call.1} parent=1 // pred_region
      %55 = dma.done [#allocation5], 1024
    $region21: #{tpu_custom_call.1} parent=1 // pred_fallthru
      _
    // Predicated region
    $region22: #{tpu_custom_call.1} parent=1 // pred_check
      _
    $region23: #{tpu_custom_call.1} parent=1 // pred_check_branch
      %57 = sbr.rel (0) target = $region25
    $region24: #{tpu_custom_call.1} parent=1 // pred_region
      %58 = dma.done [#allocation8], 1024
    $region25: #{tpu_custom_call.1} parent=1 // pred_fallthru
      _
    // Predicated region
    $region26: #{tpu_custom_call.1} parent=1 // pred_check
      _
    $region27: #{tpu_custom_call.1} parent=1 // pred_check_branch
      %60 = sbr.rel (0) target = $region29
    $region28: #{tpu_custom_call.1} parent=1 // pred_region
      %61 = dma.done [#allocation8], 1024
    $region29: #{tpu_custom_call.1} parent=1 // pred_fallthru
      _
    %p63 = scmp.eq.s32.totalorder 0, 0
    // Predicated region
    $region30: #{tpu_custom_call.1} parent=1 // pred_check
      %p64 = pneg %p63
    $region31: #{tpu_custom_call.1} parent=1 // pred_check_branch
      %66 = sbr.rel (%p64) target = $region33
    $region32: #{tpu_custom_call.1} parent=1 // pred_region
      %67 = vst [vmem:[#allocation2] sm:$0xff] 0.0
      %68 = vst [vmem:[#allocation2 + $0x8] sm:$0xff] 0.0
    $region33: #{tpu_custom_call.1} parent=1 // pred_fallthru
      _
    %v69 = vld [vmem:[#allocation4] sm:$0xf]
    %v70 = vld [vmem:[#allocation4 + $0x4] sm:$0xf]
    %v71 = vld [vmem:[#allocation4 + $0x8] sm:$0xf]
    %v72 = vld [vmem:[#allocation4 + $0xc] sm:$0xf]
    %v73 = vld [vmem:[#allocation4 + $0x10] sm:$0xf]
    %v74 = vld [vmem:[#allocation4 + $0x14] sm:$0xf]
    %v75 = vld [vmem:[#allocation4 + $0x18] sm:$0xf]
    %v76 = vld [vmem:[#allocation4 + $0x1c] sm:$0xf]
    %v77 = vld [vmem:[#allocation4 + $0x20] sm:$0xf]
    %v78 = vld [vmem:[#allocation4 + $0x24] sm:$0xf]
    %v79 = vld [vmem:[#allocation4 + $0x28] sm:$0xf]
    %v80 = vld [vmem:[#allocation4 + $0x2c] sm:$0xf]
    %v81 = vld [vmem:[#allocation4 + $0x30] sm:$0xf]
    %v82 = vld [vmem:[#allocation4 + $0x34] sm:$0xf]
    %v83 = vld [vmem:[#allocation4 + $0x38] sm:$0xf]
    %v84 = vld [vmem:[#allocation4 + $0x3c] sm:$0xf]
    %v85 = vld [vmem:[#allocation7] sm:$0xf]
    %v86 = vld [vmem:[#allocation7 + $0x4] sm:$0xf]
    %v87 = vld [vmem:[#allocation7 + $0x8] sm:$0xf]
    %v88 = vld [vmem:[#allocation7 + $0xc] sm:$0xf]
    %v89 = vld [vmem:[#allocation7 + $0x10] sm:$0xf]
    %v90 = vld [vmem:[#allocation7 + $0x14] sm:$0xf]
    %v91 = vld [vmem:[#allocation7 + $0x18] sm:$0xf]
    %v92 = vld [vmem:[#allocation7 + $0x1c] sm:$0xf]
    %v93 = vld [vmem:[#allocation7 + $0x20] sm:$0xf]
    %v94 = vld [vmem:[#allocation7 + $0x24] sm:$0xf]
    %v95 = vld [vmem:[#allocation7 + $0x28] sm:$0xf]
    %v96 = vld [vmem:[#allocation7 + $0x2c] sm:$0xf]
    %v97 = vld [vmem:[#allocation7 + $0x30] sm:$0xf]
    %v98 = vld [vmem:[#allocation7 + $0x34] sm:$0xf]
    %v99 = vld [vmem:[#allocation7 + $0x38] sm:$0xf]
    %v100 = vld [vmem:[#allocation7 + $0x3c] sm:$0xf]
    %v101 = vld [vmem:[%s3] sm:$0x1]
    %v103 = vlaneseq
    %v104 = vshrl.u32 %v103, 7
    %v105 = vsub.s32 0, %v104
    %v106 = vrot.slane %v101, %v105
    %v124 = vunpack.c.l.b16 %v69
    %v125 = vunpack.c.l.b16 %v70
    %v126 = vunpack.c.l.b16 %v71
    %v127 = vunpack.c.l.b16 %v72
    %v128 = vunpack.c.l.b16 %v73
    %v129 = vunpack.c.l.b16 %v74
    %v130 = vunpack.c.l.b16 %v75
    %v131 = vunpack.c.l.b16 %v76
    %v132 = vunpack.c.l.b16 %v77
    %v133 = vunpack.c.l.b16 %v78
    %v134 = vunpack.c.l.b16 %v79
    %v135 = vunpack.c.l.b16 %v80
    %v136 = vunpack.c.l.b16 %v81
    %v137 = vunpack.c.l.b16 %v82
    %v138 = vunpack.c.l.b16 %v83
    %v139 = vunpack.c.l.b16 %v84
    %v140 = vpack.c.b16 %v125, %v124
    %v141 = vpack.c.b16 %v127, %v126
    %v142 = vpack.c.b16 %v129, %v128
    %v143 = vpack.c.b16 %v131, %v130
    %v144 = vpack.c.b16 %v133, %v132
    %v145 = vpack.c.b16 %v135, %v134
    %v146 = vpack.c.b16 %v137, %v136
    %v147 = vpack.c.b16 %v139, %v138
    %v172 = vunpack.c.l.b16 %v85
    %v173 = vunpack.c.l.b16 %v86
    %v174 = vunpack.c.l.b16 %v87
    %v175 = vunpack.c.l.b16 %v88
    %v176 = vunpack.c.l.b16 %v89
    %v177 = vunpack.c.l.b16 %v90
    %v178 = vunpack.c.l.b16 %v91
    %v179 = vunpack.c.l.b16 %v92
    %v180 = vunpack.c.l.b16 %v93
    %v181 = vunpack.c.l.b16 %v94
    %v182 = vunpack.c.l.b16 %v95
    %v183 = vunpack.c.l.b16 %v96
    %v184 = vunpack.c.l.b16 %v97
    %v185 = vunpack.c.l.b16 %v98
    %v186 = vunpack.c.l.b16 %v99
    %v187 = vunpack.c.l.b16 %v100
    %v188 = vpack.c.b16 %v173, %v172
    %v189 = vpack.c.b16 %v175, %v174
    %v190 = vpack.c.b16 %v177, %v176
    %v191 = vpack.c.b16 %v179, %v178
    %v192 = vpack.c.b16 %v181, %v180
    %v193 = vpack.c.b16 %v183, %v182
    %v194 = vpack.c.b16 %v185, %v184
    %v195 = vpack.c.b16 %v187, %v186
    %204 = vmatprep.subr.bf16.mxu0 0
    %205 = vmatpush1.bf16.msra.mxu0 %v195
    %206 = vmatprep.subr.bf16.mxu0 0
    %207 = vmatpush1.bf16.msra.mxu0 %v194
    %208 = vmatprep.subr.bf16.mxu0 0
    %209 = vmatpush1.bf16.msra.mxu0 %v193
    %210 = vmatprep.subr.bf16.mxu0 0
    %211 = vmatpush1.bf16.msra.mxu0 %v192
    %212 = vmatprep.subr.bf16.mxu0 0
    %213 = vmatpush1.bf16.msra.mxu0 %v191
    %214 = vmatprep.subr.bf16.mxu0 0
    %215 = vmatpush1.bf16.msra.mxu0 %v190
    %216 = vmatprep.subr.bf16.mxu0 0
    %217 = vmatpush1.bf16.msra.mxu0 %v189
    %218 = vmatprep.subr.bf16.mxu0 0
    %219 = vmatpush1.bf16.msra.mxu0 %v188
    %220 = vmatprep.subr.bf16.mxu0 0
    %221 = vmatpush2.bf16.msra.mxu0 0
    %222 = vmatprep.subr.bf16.mxu0 0
    %223 = vmatpush2.bf16.msra.mxu0 0
    %224 = vmatprep.subr.bf16.mxu0 0
    %225 = vmatpush2.bf16.msra.mxu0 0
    %226 = vmatprep.subr.bf16.mxu0 0
    %227 = vmatpush2.bf16.msra.mxu0 0
    %228 = vmatprep.subr.bf16.mxu0 0
    %229 = vmatpush2.bf16.msra.mxu0 0
    %230 = vmatprep.subr.bf16.mxu0 0
    %231 = vmatpush2.bf16.msra.mxu0 0
    %232 = vmatprep.subr.bf16.mxu0 0
    %233 = vmatpush2.bf16.msra.mxu0 0
    %234 = vmatprep.subr.bf16.mxu0 0
    %235 = vmatpush2.bf16.msra.mxu0 0
    %236 = vmatprep.mubr.bf16.mxu0 0
    %237 = vmatmul.mubr.bf16.gmra.mxu0 %v140
    %v238 = vpop.f32.mrf.mxu0
    %v239 = vadd.f32 %v106, %v238
    %v240 = vpop.f32.mrf.mxu0
    %v241 = vpop.f32.mrf.mxu0
    %v242 = vadd.f32 %v106, %v241
    %v243 = vpop.f32.mrf.mxu0
    %244 = vmatprep.mubr.bf16.mxu0 0
    %245 = vmatmul.mubr.bf16.gmra.mxu0 %v141
    %v246 = vpop.f32.mrf.mxu0
    %v247 = vadd.f32 %v106, %v246
    %v248 = vpop.f32.mrf.mxu0
    %v249 = vpop.f32.mrf.mxu0
    %v250 = vadd.f32 %v106, %v249
    %v251 = vpop.f32.mrf.mxu0
    %252 = vmatprep.mubr.bf16.mxu0 0
    %253 = vmatmul.mubr.bf16.gmra.mxu0 %v142
    %v254 = vpop.f32.mrf.mxu0
    %v255 = vadd.f32 %v106, %v254
    %v256 = vpop.f32.mrf.mxu0
    %v257 = vpop.f32.mrf.mxu0
    %v258 = vadd.f32 %v106, %v257
    %v259 = vpop.f32.mrf.mxu0
    %260 = vmatprep.mubr.bf16.mxu0 0
    %261 = vmatmul.mubr.bf16.gmra.mxu0 %v143
    %v262 = vpop.f32.mrf.mxu0
    %v263 = vadd.f32 %v106, %v262
    %v264 = vpop.f32.mrf.mxu0
    %v265 = vpop.f32.mrf.mxu0
    %v266 = vadd.f32 %v106, %v265
    %v267 = vpop.f32.mrf.mxu0
    %268 = vmatprep.mubr.bf16.mxu0 0
    %269 = vmatmul.mubr.bf16.gmra.mxu0 %v144
    %v270 = vpop.f32.mrf.mxu0
    %v271 = vadd.f32 %v106, %v270
    %v272 = vpop.f32.mrf.mxu0
    %v273 = vpop.f32.mrf.mxu0
    %v274 = vadd.f32 %v106, %v273
    %v275 = vpop.f32.mrf.mxu0
    %276 = vmatprep.mubr.bf16.mxu0 0
    %277 = vmatmul.mubr.bf16.gmra.mxu0 %v145
    %v278 = vpop.f32.mrf.mxu0
    %v279 = vadd.f32 %v106, %v278
    %v280 = vpop.f32.mrf.mxu0
    %v281 = vpop.f32.mrf.mxu0
    %v282 = vadd.f32 %v106, %v281
    %v283 = vpop.f32.mrf.mxu0
    %284 = vmatprep.mubr.bf16.mxu0 0
    %285 = vmatmul.mubr.bf16.gmra.mxu0 %v146
    %v286 = vpop.f32.mrf.mxu0
    %v287 = vadd.f32 %v106, %v286
    %v288 = vpop.f32.mrf.mxu0
    %v289 = vpop.f32.mrf.mxu0
    %v290 = vadd.f32 %v106, %v289
    %v291 = vpop.f32.mrf.mxu0
    %292 = vmatprep.mubr.bf16.mxu0 0
    %293 = vmatmul.mubr.bf16.gmra.mxu0 %v147
    %v294 = vpop.f32.mrf.mxu0
    %v295 = vadd.f32 %v106, %v294
    %v296 = vpop.f32.mrf.mxu0
    %v297 = vpop.f32.mrf.mxu0
    %v298 = vadd.f32 %v106, %v297
    %v299 = vpop.f32.mrf.mxu0
    %300 = vdwg.mxu0
    %301 = vst [vmem:[#allocation3] sm:$0xff] %v239
    %302 = vst [vmem:[#allocation3 + $0x8] sm:$0xff] %v242
    %303 = vst [vmem:[#allocation3 + $0x10] sm:$0xff] %v247
    %304 = vst [vmem:[#allocation3 + $0x18] sm:$0xff] %v250
    %305 = vst [vmem:[#allocation3 + $0x20] sm:$0xff] %v255
    %306 = vst [vmem:[#allocation3 + $0x28] sm:$0xff] %v258
    %307 = vst [vmem:[#allocation3 + $0x30] sm:$0xff] %v263
    %308 = vst [vmem:[#allocation3 + $0x38] sm:$0xff] %v266
    %309 = vst [vmem:[#allocation3 + $0x40] sm:$0xff] %v271
    %310 = vst [vmem:[#allocation3 + $0x48] sm:$0xff] %v274
    %311 = vst [vmem:[#allocation3 + $0x50] sm:$0xff] %v279
    %312 = vst [vmem:[#allocation3 + $0x58] sm:$0xff] %v282
    %313 = vst [vmem:[#allocation3 + $0x60] sm:$0xff] %v287
    %314 = vst [vmem:[#allocation3 + $0x68] sm:$0xff] %v290
    %315 = vst [vmem:[#allocation3 + $0x70] sm:$0xff] %v295
    %316 = vst [vmem:[#allocation3 + $0x78] sm:$0xff] %v298
    %v317 = vld [vmem:[#allocation9] sm:$0xf]
    %v318 = vld [vmem:[#allocation9 + $0x4] sm:$0xf]
    %v319 = vld [vmem:[#allocation9 + $0x8] sm:$0xf]
    %v320 = vld [vmem:[#allocation9 + $0xc] sm:$0xf]
    %v321 = vld [vmem:[#allocation9 + $0x10] sm:$0xf]
    %v322 = vld [vmem:[#allocation9 + $0x14] sm:$0xf]
    %v323 = vld [vmem:[#allocation9 + $0x18] sm:$0xf]
    %v324 = vld [vmem:[#allocation9 + $0x1c] sm:$0xf]
    %v325 = vld [vmem:[#allocation9 + $0x20] sm:$0xf]
    %v326 = vld [vmem:[#allocation9 + $0x24] sm:$0xf]
    %v327 = vld [vmem:[#allocation9 + $0x28] sm:$0xf]
    %v328 = vld [vmem:[#allocation9 + $0x2c] sm:$0xf]
    %v329 = vld [vmem:[#allocation9 + $0x30] sm:$0xf]
    %v330 = vld [vmem:[#allocation9 + $0x34] sm:$0xf]
    %v331 = vld [vmem:[#allocation9 + $0x38] sm:$0xf]
    %v332 = vld [vmem:[#allocation9 + $0x3c] sm:$0xf]
    %v333 = vld [vmem:[#allocation2] sm:$0xff]
    %v334 = vld [vmem:[#allocation2 + $0x8] sm:$0xff]
    %v335 = vpack.c.bf16 %v334, %v333
    %v336 = vld [vmem:[#allocation3] sm:$0xff]
    %v337 = vld [vmem:[#allocation3 + $0x8] sm:$0xff]
    %v354 = vunpack.c.l.b16 %v317
    %v355 = vunpack.c.l.b16 %v318
    %v356 = vunpack.c.l.b16 %v319
    %v357 = vunpack.c.l.b16 %v320
    %v358 = vunpack.c.l.b16 %v321
    %v359 = vunpack.c.l.b16 %v322
    %v360 = vunpack.c.l.b16 %v323
    %v361 = vunpack.c.l.b16 %v324
    %v362 = vunpack.c.l.b16 %v325
    %v363 = vunpack.c.l.b16 %v326
    %v364 = vunpack.c.l.b16 %v327
    %v365 = vunpack.c.l.b16 %v328
    %v366 = vunpack.c.l.b16 %v329
    %v367 = vunpack.c.l.b16 %v330
    %v368 = vunpack.c.l.b16 %v331
    %v369 = vunpack.c.l.b16 %v332
    %v370 = vpack.c.b16 %v355, %v354
    %v371 = vpack.c.b16 %v357, %v356
    %v372 = vpack.c.b16 %v359, %v358
    %v373 = vpack.c.b16 %v361, %v360
    %v374 = vpack.c.b16 %v363, %v362
    %v375 = vpack.c.b16 %v365, %v364
    %v376 = vpack.c.b16 %v367, %v366
    %v377 = vpack.c.b16 %v369, %v368
    %386 = vmatprep.subr.bf16.mxu0 0
    %387 = vmatpush1.bf16.msra.mxu0 %v377
    %388 = vmatprep.subr.bf16.mxu0 0
    %389 = vmatpush1.bf16.msra.mxu0 %v376
    %390 = vmatprep.subr.bf16.mxu0 0
    %391 = vmatpush1.bf16.msra.mxu0 %v375
    %392 = vmatprep.subr.bf16.mxu0 0
    %393 = vmatpush1.bf16.msra.mxu0 %v374
    %394 = vmatprep.subr.bf16.mxu0 0
    %395 = vmatpush1.bf16.msra.mxu0 %v373
    %396 = vmatprep.subr.bf16.mxu0 0
    %397 = vmatpush1.bf16.msra.mxu0 %v372
    %398 = vmatprep.subr.bf16.mxu0 0
    %399 = vmatpush1.bf16.msra.mxu0 %v371
    %400 = vmatprep.subr.bf16.mxu0 0
    %401 = vmatpush1.bf16.msra.mxu0 %v370
    %402 = vmatprep.subr.bf16.mxu0 0
    %403 = vmatpush2.bf16.msra.mxu0 0
    %404 = vmatprep.subr.bf16.mxu0 0
    %405 = vmatpush2.bf16.msra.mxu0 0
    %406 = vmatprep.subr.bf16.mxu0 0
    %407 = vmatpush2.bf16.msra.mxu0 0
    %408 = vmatprep.subr.bf16.mxu0 0
    %409 = vmatpush2.bf16.msra.mxu0 0
    %410 = vmatprep.subr.bf16.mxu0 0
    %411 = vmatpush2.bf16.msra.mxu0 0
    %412 = vmatprep.subr.bf16.mxu0 0
    %413 = vmatpush2.bf16.msra.mxu0 0
    %414 = vmatprep.subr.bf16.mxu0 0
    %415 = vmatpush2.bf16.msra.mxu0 0
    %416 = vmatprep.subr.bf16.mxu0 0
    %417 = vmatpush2.bf16.msra.mxu0 0
    %418 = vmatprep.mubr.bf16.mxu0 0
    %419 = vmatmul.mubr.bf16.gmra.mxu0 %v335
    %v420 = vpop.f32.mrf.mxu0
    %v421 = vadd.f32 %v336, %v420
    %v422 = vpop.f32.mrf.mxu0
    %v423 = vpop.f32.mrf.mxu0
    %v424 = vadd.f32 %v337, %v423
    %v425 = vpop.f32.mrf.mxu0
    %426 = vdwg.mxu0
    %v427 = vmul.f32 %v333, 0.1
    %v428 = vmul.f32 %v334, 0.1
    %v429 = vtanh.pop %v421
    %v430 = vtanh.pop %v424
    %v431 = vmul.f32 %v429, 0.9
    %v432 = vmul.f32 %v430, 0.9
    %v433 = vadd.f32 %v427, %v431
    %v434 = vadd.f32 %v428, %v432
    %s435 = smul.u32 0, 8
    %p436 = scmp.lt.s32.totalorder %s435, 8
    %s437 = scalar_select %p436, 1, 0
    %v438 = vstv %s437
    %vm439 = vcmp.eq.s32.totalorder %v438, 1
    %v440 = vsel %vm439, %v433, %v333
    %v441 = vsel %vm439, %v434, %v334
    %442 = vst [vmem:[#allocation2] sm:$0xff] %v440
    %443 = vst [vmem:[#allocation2 + $0x8] sm:$0xff] %v441
    %v444 = vpack.c.bf16 %v441, %v440
    %v446 = vunpack.c.l.b16 %v444
    %v447 = vunpack.c.h.b16 %v444
    %v448 = vpack.c.b16 %v446, %v446
    %v449 = vpack.c.b16 %v447, %v447
    %452 = vst [vmem:[#allocation10] sm:$0xf] %v448
    %453 = vst [vmem:[#allocation10 + $0x4] sm:$0xf] %v449
    %v454 = vld [vmem:[#allocation2] sm:$0xff]
    %v455 = vld [vmem:[#allocation2 + $0x8] sm:$0xff]
    %v456 = vpack.c.bf16 %v455, %v454
    %s457 = scalar_lea.vmem [#allocation3], 16
    %v458 = vld [vmem:[%s457] sm:$0xff]
    %v459 = vld [vmem:[%s457 + $0x8] sm:$0xff]
    %460 = vmatprep.subr.bf16.mxu0 0
    %461 = vmatpush1.bf16.msra.mxu0 %v377
    %462 = vmatprep.subr.bf16.mxu0 0
    %463 = vmatpush1.bf16.msra.mxu0 %v376
    %464 = vmatprep.subr.bf16.mxu0 0
    %465 = vmatpush1.bf16.msra.mxu0 %v375
    %466 = vmatprep.subr.bf16.mxu0 0
    %467 = vmatpush1.bf16.msra.mxu0 %v374
    %468 = vmatprep.subr.bf16.mxu0 0
    %469 = vmatpush1.bf16.msra.mxu0 %v373
    %470 = vmatprep.subr.bf16.mxu0 0
    %471 = vmatpush1.bf16.msra.mxu0 %v372
    %472 = vmatprep.subr.bf16.mxu0 0
    %473 = vmatpush1.bf16.msra.mxu0 %v371
    %474 = vmatprep.subr.bf16.mxu0 0
    %475 = vmatpush1.bf16.msra.mxu0 %v370
    %476 = vmatprep.subr.bf16.mxu0 0
    %477 = vmatpush2.bf16.msra.mxu0 0
    %478 = vmatprep.subr.bf16.mxu0 0
    %479 = vmatpush2.bf16.msra.mxu0 0
    %480 = vmatprep.subr.bf16.mxu0 0
    %481 = vmatpush2.bf16.msra.mxu0 0
    %482 = vmatprep.subr.bf16.mxu0 0
    %483 = vmatpush2.bf16.msra.mxu0 0
    %484 = vmatprep.subr.bf16.mxu0 0
    %485 = vmatpush2.bf16.msra.mxu0 0
    %486 = vmatprep.subr.bf16.mxu0 0
    %487 = vmatpush2.bf16.msra.mxu0 0
    %488 = vmatprep.subr.bf16.mxu0 0
    %489 = vmatpush2.bf16.msra.mxu0 0
    %490 = vmatprep.subr.bf16.mxu0 0
    %491 = vmatpush2.bf16.msra.mxu0 0
    %492 = vmatprep.mubr.bf16.mxu0 0
    %493 = vmatmul.mubr.bf16.gmra.mxu0 %v456
    %v494 = vpop.f32.mrf.mxu0
    %v495 = vadd.f32 %v458, %v494
    %v496 = vpop.f32.mrf.mxu0
    %v497 = vpop.f32.mrf.mxu0
    %v498 = vadd.f32 %v459, %v497
    %v499 = vpop.f32.mrf.mxu0
    %500 = vdwg.mxu0
    %v501 = vmul.f32 %v454, 0.1
    %v502 = vmul.f32 %v455, 0.1
    %v503 = vtanh.pop %v495
    %v504 = vtanh.pop %v498
    %v505 = vmul.f32 %v503, 0.9
    %v506 = vmul.f32 %v504, 0.9
    %v507 = vadd.f32 %v501, %v505
    %v508 = vadd.f32 %v502, %v506
    %s509 = sadd.s32 %s435, 1
    %p510 = scmp.lt.s32.totalorder %s509, 8
    %s511 = scalar_select %p510, 1, 0
    %v512 = vstv %s511
    %vm513 = vcmp.eq.s32.totalorder %v512, 1
    %v514 = vsel %vm513, %v507, %v454
    %v515 = vsel %vm513, %v508, %v455
    %516 = vst [vmem:[#allocation2] sm:$0xff] %v514
    %517 = vst [vmem:[#allocation2 + $0x8] sm:$0xff] %v515
    %v518 = vpack.c.bf16 %v515, %v514
    %v520 = vunpack.c.l.b16 %v518
    %v521 = vunpack.c.h.b16 %v518
    %v522 = vpack.c.b16 %v520, %v520
    %v523 = vpack.c.b16 %v521, %v521
    %s526 = scalar_lea.vmem [#allocation10], 8
    %527 = vst [vmem:[%s526] sm:$0xf] %v522
    %528 = vst [vmem:[%s526 + $0x4] sm:$0xf] %v523
    %v529 = vld [vmem:[#allocation2] sm:$0xff]
    %v530 = vld [vmem:[#allocation2 + $0x8] sm:$0xff]
    %v531 = vpack.c.bf16 %v530, %v529
    %s532 = scalar_lea.vmem [#allocation3], 32
    %v533 = vld [vmem:[%s532] sm:$0xff]
    %v534 = vld [vmem:[%s532 + $0x8] sm:$0xff]
    %535 = vmatprep.subr.bf16.mxu0 0
    %536 = vmatpush1.bf16.msra.mxu0 %v377
    %537 = vmatprep.subr.bf16.mxu0 0
    %538 = vmatpush1.bf16.msra.mxu0 %v376
    %539 = vmatprep.subr.bf16.mxu0 0
    %540 = vmatpush1.bf16.msra.mxu0 %v375
    %541 = vmatprep.subr.bf16.mxu0 0
    %542 = vmatpush1.bf16.msra.mxu0 %v374
    %543 = vmatprep.subr.bf16.mxu0 0
    %544 = vmatpush1.bf16.msra.mxu0 %v373
    %545 = vmatprep.subr.bf16.mxu0 0
    %546 = vmatpush1.bf16.msra.mxu0 %v372
    %547 = vmatprep.subr.bf16.mxu0 0
    %548 = vmatpush1.bf16.msra.mxu0 %v371
    %549 = vmatprep.subr.bf16.mxu0 0
    %550 = vmatpush1.bf16.msra.mxu0 %v370
    %551 = vmatprep.subr.bf16.mxu0 0
    %552 = vmatpush2.bf16.msra.mxu0 0
    %553 = vmatprep.subr.bf16.mxu0 0
    %554 = vmatpush2.bf16.msra.mxu0 0
    %555 = vmatprep.subr.bf16.mxu0 0
    %556 = vmatpush2.bf16.msra.mxu0 0
    %557 = vmatprep.subr.bf16.mxu0 0
    %558 = vmatpush2.bf16.msra.mxu0 0
    %559 = vmatprep.subr.bf16.mxu0 0
    %560 = vmatpush2.bf16.msra.mxu0 0
    %561 = vmatprep.subr.bf16.mxu0 0
    %562 = vmatpush2.bf16.msra.mxu0 0
    %563 = vmatprep.subr.bf16.mxu0 0
    %564 = vmatpush2.bf16.msra.mxu0 0
    %565 = vmatprep.subr.bf16.mxu0 0
    %566 = vmatpush2.bf16.msra.mxu0 0
    %567 = vmatprep.mubr.bf16.mxu0 0
    %568 = vmatmul.mubr.bf16.gmra.mxu0 %v531
    %v569 = vpop.f32.mrf.mxu0
    %v570 = vadd.f32 %v533, %v569
    %v571 = vpop.f32.mrf.mxu0
    %v572 = vpop.f32.mrf.mxu0
    %v573 = vadd.f32 %v534, %v572
    %v574 = vpop.f32.mrf.mxu0
    %575 = vdwg.mxu0
    %v576 = vmul.f32 %v529, 0.1
    %v577 = vmul.f32 %v530, 0.1
    %v578 = vtanh.pop %v570
    %v579 = vtanh.pop %v573
    %v580 = vmul.f32 %v578, 0.9
    %v581 = vmul.f32 %v579, 0.9
    %v582 = vadd.f32 %v576, %v580
    %v583 = vadd.f32 %v577, %v581
    %s584 = sadd.s32 %s435, 2
    %p585 = scmp.lt.s32.totalorder %s584, 8
    %s586 = scalar_select %p585, 1, 0
    %v587 = vstv %s586
    %vm588 = vcmp.eq.s32.totalorder %v587, 1
    %v589 = vsel %vm588, %v582, %v529
    %v590 = vsel %vm588, %v583, %v530
    %591 = vst [vmem:[#allocation2] sm:$0xff] %v589
    %592 = vst [vmem:[#allocation2 + $0x8] sm:$0xff] %v590
    %v593 = vpack.c.bf16 %v590, %v589
    %v595 = vunpack.c.l.b16 %v593
    %v596 = vunpack.c.h.b16 %v593
    %v597 = vpack.c.b16 %v595, %v595
    %v598 = vpack.c.b16 %v596, %v596
    %s601 = scalar_lea.vmem [#allocation10], 16
    %602 = vst [vmem:[%s601] sm:$0xf] %v597
    %603 = vst [vmem:[%s601 + $0x4] sm:$0xf] %v598
    %v604 = vld [vmem:[#allocation2] sm:$0xff]
    %v605 = vld [vmem:[#allocation2 + $0x8] sm:$0xff]
    %v606 = vpack.c.bf16 %v605, %v604
    %s607 = scalar_lea.vmem [#allocation3], 48
    %v608 = vld [vmem:[%s607] sm:$0xff]
    %v609 = vld [vmem:[%s607 + $0x8] sm:$0xff]
    %610 = vmatprep.subr.bf16.mxu0 0
    %611 = vmatpush1.bf16.msra.mxu0 %v377
    %612 = vmatprep.subr.bf16.mxu0 0
    %613 = vmatpush1.bf16.msra.mxu0 %v376
    %614 = vmatprep.subr.bf16.mxu0 0
    %615 = vmatpush1.bf16.msra.mxu0 %v375
    %616 = vmatprep.subr.bf16.mxu0 0
    %617 = vmatpush1.bf16.msra.mxu0 %v374
    %618 = vmatprep.subr.bf16.mxu0 0
    %619 = vmatpush1.bf16.msra.mxu0 %v373
    %620 = vmatprep.subr.bf16.mxu0 0
    %621 = vmatpush1.bf16.msra.mxu0 %v372
    %622 = vmatprep.subr.bf16.mxu0 0
    %623 = vmatpush1.bf16.msra.mxu0 %v371
    %624 = vmatprep.subr.bf16.mxu0 0
    %625 = vmatpush1.bf16.msra.mxu0 %v370
    %626 = vmatprep.subr.bf16.mxu0 0
    %627 = vmatpush2.bf16.msra.mxu0 0
    %628 = vmatprep.subr.bf16.mxu0 0
    %629 = vmatpush2.bf16.msra.mxu0 0
    %630 = vmatprep.subr.bf16.mxu0 0
    %631 = vmatpush2.bf16.msra.mxu0 0
    %632 = vmatprep.subr.bf16.mxu0 0
    %633 = vmatpush2.bf16.msra.mxu0 0
    %634 = vmatprep.subr.bf16.mxu0 0
    %635 = vmatpush2.bf16.msra.mxu0 0
    %636 = vmatprep.subr.bf16.mxu0 0
    %637 = vmatpush2.bf16.msra.mxu0 0
    %638 = vmatprep.subr.bf16.mxu0 0
    %639 = vmatpush2.bf16.msra.mxu0 0
    %640 = vmatprep.subr.bf16.mxu0 0
    %641 = vmatpush2.bf16.msra.mxu0 0
    %642 = vmatprep.mubr.bf16.mxu0 0
    %643 = vmatmul.mubr.bf16.gmra.mxu0 %v606
    %v644 = vpop.f32.mrf.mxu0
    %v645 = vadd.f32 %v608, %v644
    %v646 = vpop.f32.mrf.mxu0
    %v647 = vpop.f32.mrf.mxu0
    %v648 = vadd.f32 %v609, %v647
    %v649 = vpop.f32.mrf.mxu0
    %650 = vdwg.mxu0
    %v651 = vmul.f32 %v604, 0.1
    %v652 = vmul.f32 %v605, 0.1
    %v653 = vtanh.pop %v645
    %v654 = vtanh.pop %v648
    %v655 = vmul.f32 %v653, 0.9
    %v656 = vmul.f32 %v654, 0.9
    %v657 = vadd.f32 %v651, %v655
    %v658 = vadd.f32 %v652, %v656
    %s659 = sadd.s32 %s435, 3
    %p660 = scmp.lt.s32.totalorder %s659, 8
    %s661 = scalar_select %p660, 1, 0
    %v662 = vstv %s661
    %vm663 = vcmp.eq.s32.totalorder %v662, 1
    %v664 = vsel %vm663, %v657, %v604
    %v665 = vsel %vm663, %v658, %v605
    %666 = vst [vmem:[#allocation2] sm:$0xff] %v664
    %667 = vst [vmem:[#allocation2 + $0x8] sm:$0xff] %v665
    %v668 = vpack.c.bf16 %v665, %v664
    %v670 = vunpack.c.l.b16 %v668
    %v671 = vunpack.c.h.b16 %v668
    %v672 = vpack.c.b16 %v670, %v670
    %v673 = vpack.c.b16 %v671, %v671
    %s676 = scalar_lea.vmem [#allocation10], 24
    %677 = vst [vmem:[%s676] sm:$0xf] %v672
    %678 = vst [vmem:[%s676 + $0x4] sm:$0xf] %v673
    %v679 = vld [vmem:[#allocation2] sm:$0xff]
    %v680 = vld [vmem:[#allocation2 + $0x8] sm:$0xff]
    %v681 = vpack.c.bf16 %v680, %v679
    %s682 = scalar_lea.vmem [#allocation3], 64
    %v683 = vld [vmem:[%s682] sm:$0xff]
    %v684 = vld [vmem:[%s682 + $0x8] sm:$0xff]
    %685 = vmatprep.subr.bf16.mxu0 0
    %686 = vmatpush1.bf16.msra.mxu0 %v377
    %687 = vmatprep.subr.bf16.mxu0 0
    %688 = vmatpush1.bf16.msra.mxu0 %v376
    %689 = vmatprep.subr.bf16.mxu0 0
    %690 = vmatpush1.bf16.msra.mxu0 %v375
    %691 = vmatprep.subr.bf16.mxu0 0
    %692 = vmatpush1.bf16.msra.mxu0 %v374
    %693 = vmatprep.subr.bf16.mxu0 0
    %694 = vmatpush1.bf16.msra.mxu0 %v373
    %695 = vmatprep.subr.bf16.mxu0 0
    %696 = vmatpush1.bf16.msra.mxu0 %v372
    %697 = vmatprep.subr.bf16.mxu0 0
    %698 = vmatpush1.bf16.msra.mxu0 %v371
    %699 = vmatprep.subr.bf16.mxu0 0
    %700 = vmatpush1.bf16.msra.mxu0 %v370
    %701 = vmatprep.subr.bf16.mxu0 0
    %702 = vmatpush2.bf16.msra.mxu0 0
    %703 = vmatprep.subr.bf16.mxu0 0
    %704 = vmatpush2.bf16.msra.mxu0 0
    %705 = vmatprep.subr.bf16.mxu0 0
    %706 = vmatpush2.bf16.msra.mxu0 0
    %707 = vmatprep.subr.bf16.mxu0 0
    %708 = vmatpush2.bf16.msra.mxu0 0
    %709 = vmatprep.subr.bf16.mxu0 0
    %710 = vmatpush2.bf16.msra.mxu0 0
    %711 = vmatprep.subr.bf16.mxu0 0
    %712 = vmatpush2.bf16.msra.mxu0 0
    %713 = vmatprep.subr.bf16.mxu0 0
    %714 = vmatpush2.bf16.msra.mxu0 0
    %715 = vmatprep.subr.bf16.mxu0 0
    %716 = vmatpush2.bf16.msra.mxu0 0
    %717 = vmatprep.mubr.bf16.mxu0 0
    %718 = vmatmul.mubr.bf16.gmra.mxu0 %v681
    %v719 = vpop.f32.mrf.mxu0
    %v720 = vadd.f32 %v683, %v719
    %v721 = vpop.f32.mrf.mxu0
    %v722 = vpop.f32.mrf.mxu0
    %v723 = vadd.f32 %v684, %v722
    %v724 = vpop.f32.mrf.mxu0
    %725 = vdwg.mxu0
    %v726 = vmul.f32 %v679, 0.1
    %v727 = vmul.f32 %v680, 0.1
    %v728 = vtanh.pop %v720
    %v729 = vtanh.pop %v723
    %v730 = vmul.f32 %v728, 0.9
    %v731 = vmul.f32 %v729, 0.9
    %v732 = vadd.f32 %v726, %v730
    %v733 = vadd.f32 %v727, %v731
    %s734 = sadd.s32 %s435, 4
    %p735 = scmp.lt.s32.totalorder %s734, 8
    %s736 = scalar_select %p735, 1, 0
    %v737 = vstv %s736
    %vm738 = vcmp.eq.s32.totalorder %v737, 1
    %v739 = vsel %vm738, %v732, %v679
    %v740 = vsel %vm738, %v733, %v680
    %741 = vst [vmem:[#allocation2] sm:$0xff] %v739
    %742 = vst [vmem:[#allocation2 + $0x8] sm:$0xff] %v740
    %v743 = vpack.c.bf16 %v740, %v739
    %v745 = vunpack.c.l.b16 %v743
    %v746 = vunpack.c.h.b16 %v743
    %v747 = vpack.c.b16 %v745, %v745
    %v748 = vpack.c.b16 %v746, %v746
    %s751 = scalar_lea.vmem [#allocation10], 32
    %752 = vst [vmem:[%s751] sm:$0xf] %v747
    %753 = vst [vmem:[%s751 + $0x4] sm:$0xf] %v748
    %v754 = vld [vmem:[#allocation2] sm:$0xff]
    %v755 = vld [vmem:[#allocation2 + $0x8] sm:$0xff]
    %v756 = vpack.c.bf16 %v755, %v754
    %s757 = scalar_lea.vmem [#allocation3], 80
    %v758 = vld [vmem:[%s757] sm:$0xff]
    %v759 = vld [vmem:[%s757 + $0x8] sm:$0xff]
    %760 = vmatprep.subr.bf16.mxu0 0
    %761 = vmatpush1.bf16.msra.mxu0 %v377
    %762 = vmatprep.subr.bf16.mxu0 0
    %763 = vmatpush1.bf16.msra.mxu0 %v376
    %764 = vmatprep.subr.bf16.mxu0 0
    %765 = vmatpush1.bf16.msra.mxu0 %v375
    %766 = vmatprep.subr.bf16.mxu0 0
    %767 = vmatpush1.bf16.msra.mxu0 %v374
    %768 = vmatprep.subr.bf16.mxu0 0
    %769 = vmatpush1.bf16.msra.mxu0 %v373
    %770 = vmatprep.subr.bf16.mxu0 0
    %771 = vmatpush1.bf16.msra.mxu0 %v372
    %772 = vmatprep.subr.bf16.mxu0 0
    %773 = vmatpush1.bf16.msra.mxu0 %v371
    %774 = vmatprep.subr.bf16.mxu0 0
    %775 = vmatpush1.bf16.msra.mxu0 %v370
    %776 = vmatprep.subr.bf16.mxu0 0
    %777 = vmatpush2.bf16.msra.mxu0 0
    %778 = vmatprep.subr.bf16.mxu0 0
    %779 = vmatpush2.bf16.msra.mxu0 0
    %780 = vmatprep.subr.bf16.mxu0 0
    %781 = vmatpush2.bf16.msra.mxu0 0
    %782 = vmatprep.subr.bf16.mxu0 0
    %783 = vmatpush2.bf16.msra.mxu0 0
    %784 = vmatprep.subr.bf16.mxu0 0
    %785 = vmatpush2.bf16.msra.mxu0 0
    %786 = vmatprep.subr.bf16.mxu0 0
    %787 = vmatpush2.bf16.msra.mxu0 0
    %788 = vmatprep.subr.bf16.mxu0 0
    %789 = vmatpush2.bf16.msra.mxu0 0
    %790 = vmatprep.subr.bf16.mxu0 0
    %791 = vmatpush2.bf16.msra.mxu0 0
    %792 = vmatprep.mubr.bf16.mxu0 0
    %793 = vmatmul.mubr.bf16.gmra.mxu0 %v756
    %v794 = vpop.f32.mrf.mxu0
    %v795 = vadd.f32 %v758, %v794
    %v796 = vpop.f32.mrf.mxu0
    %v797 = vpop.f32.mrf.mxu0
    %v798 = vadd.f32 %v759, %v797
    %v799 = vpop.f32.mrf.mxu0
    %800 = vdwg.mxu0
    %v801 = vmul.f32 %v754, 0.1
    %v802 = vmul.f32 %v755, 0.1
    %v803 = vtanh.pop %v795
    %v804 = vtanh.pop %v798
    %v805 = vmul.f32 %v803, 0.9
    %v806 = vmul.f32 %v804, 0.9
    %v807 = vadd.f32 %v801, %v805
    %v808 = vadd.f32 %v802, %v806
    %s809 = sadd.s32 %s435, 5
    %p810 = scmp.lt.s32.totalorder %s809, 8
    %s811 = scalar_select %p810, 1, 0
    %v812 = vstv %s811
    %vm813 = vcmp.eq.s32.totalorder %v812, 1
    %v814 = vsel %vm813, %v807, %v754
    %v815 = vsel %vm813, %v808, %v755
    %816 = vst [vmem:[#allocation2] sm:$0xff] %v814
    %817 = vst [vmem:[#allocation2 + $0x8] sm:$0xff] %v815
    %v818 = vpack.c.bf16 %v815, %v814
    %v820 = vunpack.c.l.b16 %v818
    %v821 = vunpack.c.h.b16 %v818
    %v822 = vpack.c.b16 %v820, %v820
    %v823 = vpack.c.b16 %v821, %v821
    %s826 = scalar_lea.vmem [#allocation10], 40
    %827 = vst [vmem:[%s826] sm:$0xf] %v822
    %828 = vst [vmem:[%s826 + $0x4] sm:$0xf] %v823
    %v829 = vld [vmem:[#allocation2] sm:$0xff]
    %v830 = vld [vmem:[#allocation2 + $0x8] sm:$0xff]
    %v831 = vpack.c.bf16 %v830, %v829
    %s832 = scalar_lea.vmem [#allocation3], 96
    %v833 = vld [vmem:[%s832] sm:$0xff]
    %v834 = vld [vmem:[%s832 + $0x8] sm:$0xff]
    %835 = vmatprep.subr.bf16.mxu0 0
    %836 = vmatpush1.bf16.msra.mxu0 %v377
    %837 = vmatprep.subr.bf16.mxu0 0
    %838 = vmatpush1.bf16.msra.mxu0 %v376
    %839 = vmatprep.subr.bf16.mxu0 0
    %840 = vmatpush1.bf16.msra.mxu0 %v375
    %841 = vmatprep.subr.bf16.mxu0 0
    %842 = vmatpush1.bf16.msra.mxu0 %v374
    %843 = vmatprep.subr.bf16.mxu0 0
    %844 = vmatpush1.bf16.msra.mxu0 %v373
    %845 = vmatprep.subr.bf16.mxu0 0
    %846 = vmatpush1.bf16.msra.mxu0 %v372
    %847 = vmatprep.subr.bf16.mxu0 0
    %848 = vmatpush1.bf16.msra.mxu0 %v371
    %849 = vmatprep.subr.bf16.mxu0 0
    %850 = vmatpush1.bf16.msra.mxu0 %v370
    %851 = vmatprep.subr.bf16.mxu0 0
    %852 = vmatpush2.bf16.msra.mxu0 0
    %853 = vmatprep.subr.bf16.mxu0 0
    %854 = vmatpush2.bf16.msra.mxu0 0
    %855 = vmatprep.subr.bf16.mxu0 0
    %856 = vmatpush2.bf16.msra.mxu0 0
    %857 = vmatprep.subr.bf16.mxu0 0
    %858 = vmatpush2.bf16.msra.mxu0 0
    %859 = vmatprep.subr.bf16.mxu0 0
    %860 = vmatpush2.bf16.msra.mxu0 0
    %861 = vmatprep.subr.bf16.mxu0 0
    %862 = vmatpush2.bf16.msra.mxu0 0
    %863 = vmatprep.subr.bf16.mxu0 0
    %864 = vmatpush2.bf16.msra.mxu0 0
    %865 = vmatprep.subr.bf16.mxu0 0
    %866 = vmatpush2.bf16.msra.mxu0 0
    %867 = vmatprep.mubr.bf16.mxu0 0
    %868 = vmatmul.mubr.bf16.gmra.mxu0 %v831
    %v869 = vpop.f32.mrf.mxu0
    %v870 = vadd.f32 %v833, %v869
    %v871 = vpop.f32.mrf.mxu0
    %v872 = vpop.f32.mrf.mxu0
    %v873 = vadd.f32 %v834, %v872
    %v874 = vpop.f32.mrf.mxu0
    %875 = vdwg.mxu0
    %v876 = vmul.f32 %v829, 0.1
    %v877 = vmul.f32 %v830, 0.1
    %v878 = vtanh.pop %v870
    %v879 = vtanh.pop %v873
    %v880 = vmul.f32 %v878, 0.9
    %v881 = vmul.f32 %v879, 0.9
    %v882 = vadd.f32 %v876, %v880
    %v883 = vadd.f32 %v877, %v881
    %s884 = sadd.s32 %s435, 6
    %p885 = scmp.lt.s32.totalorder %s884, 8
    %s886 = scalar_select %p885, 1, 0
    %v887 = vstv %s886
    %vm888 = vcmp.eq.s32.totalorder %v887, 1
    %v889 = vsel %vm888, %v882, %v829
    %v890 = vsel %vm888, %v883, %v830
    %891 = vst [vmem:[#allocation2] sm:$0xff] %v889
    %892 = vst [vmem:[#allocation2 + $0x8] sm:$0xff] %v890
    %v893 = vpack.c.bf16 %v890, %v889
    %v895 = vunpack.c.l.b16 %v893
    %v896 = vunpack.c.h.b16 %v893
    %v897 = vpack.c.b16 %v895, %v895
    %v898 = vpack.c.b16 %v896, %v896
    %s901 = scalar_lea.vmem [#allocation10], 48
    %902 = vst [vmem:[%s901] sm:$0xf] %v897
    %903 = vst [vmem:[%s901 + $0x4] sm:$0xf] %v898
    %v904 = vld [vmem:[#allocation2] sm:$0xff]
    %v905 = vld [vmem:[#allocation2 + $0x8] sm:$0xff]
    %v906 = vpack.c.bf16 %v905, %v904
    %s907 = scalar_lea.vmem [#allocation3], 112
    %v908 = vld [vmem:[%s907] sm:$0xff]
    %v909 = vld [vmem:[%s907 + $0x8] sm:$0xff]
    %910 = vmatprep.subr.bf16.mxu0 0
    %911 = vmatpush1.bf16.msra.mxu0 %v377
    %912 = vmatprep.subr.bf16.mxu0 0
    %913 = vmatpush1.bf16.msra.mxu0 %v376
    %914 = vmatprep.subr.bf16.mxu0 0
    %915 = vmatpush1.bf16.msra.mxu0 %v375
    %916 = vmatprep.subr.bf16.mxu0 0
    %917 = vmatpush1.bf16.msra.mxu0 %v374
    %918 = vmatprep.subr.bf16.mxu0 0
    %919 = vmatpush1.bf16.msra.mxu0 %v373
    %920 = vmatprep.subr.bf16.mxu0 0
    %921 = vmatpush1.bf16.msra.mxu0 %v372
    %922 = vmatprep.subr.bf16.mxu0 0
    %923 = vmatpush1.bf16.msra.mxu0 %v371
    %924 = vmatprep.subr.bf16.mxu0 0
    %925 = vmatpush1.bf16.msra.mxu0 %v370
    %926 = vmatprep.subr.bf16.mxu0 0
    %927 = vmatpush2.bf16.msra.mxu0 0
    %928 = vmatprep.subr.bf16.mxu0 0
    %929 = vmatpush2.bf16.msra.mxu0 0
    %930 = vmatprep.subr.bf16.mxu0 0
    %931 = vmatpush2.bf16.msra.mxu0 0
    %932 = vmatprep.subr.bf16.mxu0 0
    %933 = vmatpush2.bf16.msra.mxu0 0
    %934 = vmatprep.subr.bf16.mxu0 0
    %935 = vmatpush2.bf16.msra.mxu0 0
    %936 = vmatprep.subr.bf16.mxu0 0
    %937 = vmatpush2.bf16.msra.mxu0 0
    %938 = vmatprep.subr.bf16.mxu0 0
    %939 = vmatpush2.bf16.msra.mxu0 0
    %940 = vmatprep.subr.bf16.mxu0 0
    %941 = vmatpush2.bf16.msra.mxu0 0
    %942 = vmatprep.mubr.bf16.mxu0 0
    %943 = vmatmul.mubr.bf16.gmra.mxu0 %v906
    %v944 = vpop.f32.mrf.mxu0
    %v945 = vadd.f32 %v908, %v944
    %v946 = vpop.f32.mrf.mxu0
    %v947 = vpop.f32.mrf.mxu0
    %v948 = vadd.f32 %v909, %v947
    %v949 = vpop.f32.mrf.mxu0
    %950 = vdwg.mxu0
    %v951 = vmul.f32 %v904, 0.1
    %v952 = vmul.f32 %v905, 0.1
    %v953 = vtanh.pop %v945
    %v954 = vtanh.pop %v948
    %v955 = vmul.f32 %v953, 0.9
    %v956 = vmul.f32 %v954, 0.9
    %v957 = vadd.f32 %v951, %v955
    %v958 = vadd.f32 %v952, %v956
    %s959 = sadd.s32 %s435, 7
    %p960 = scmp.lt.s32.totalorder %s959, 8
    %s961 = scalar_select %p960, 1, 0
    %v962 = vstv %s961
    %vm963 = vcmp.eq.s32.totalorder %v962, 1
    %v964 = vsel %vm963, %v957, %v904
    %v965 = vsel %vm963, %v958, %v905
    %966 = vst [vmem:[#allocation2] sm:$0xff] %v964
    %967 = vst [vmem:[#allocation2 + $0x8] sm:$0xff] %v965
    %v968 = vpack.c.bf16 %v965, %v964
    %v970 = vunpack.c.l.b16 %v968
    %v971 = vunpack.c.h.b16 %v968
    %v972 = vpack.c.b16 %v970, %v970
    %v973 = vpack.c.b16 %v971, %v971
    %s976 = scalar_lea.vmem [#allocation10], 56
    %977 = vst [vmem:[%s976] sm:$0xf] %v972
    %978 = vst [vmem:[%s976 + $0x4] sm:$0xf] %v973
    %v979 = vld [vmem:[#allocation2] sm:$0xff]
    %v980 = vld [vmem:[#allocation2 + $0x8] sm:$0xff]
    %981 = vst [vmem:[#allocation11] sm:$0xff] %v979
    %982 = vst [vmem:[#allocation11 + $0x8] sm:$0xff] %v980
    // Predicated region
    $region34: #{tpu_custom_call.1} parent=1 // pred_check
      _
    $region35: #{tpu_custom_call.1} parent=1 // pred_check_branch
      %984 = sbr.rel (0) target = $region37
    $region36: #{tpu_custom_call.1} parent=1 // pred_region
      %s986 = ssub.s32 1024, 1024
      %987 = vsyncadd [#allocation6], %s986
      %s988 = sshll.u32 [#allocation10], 4
      %s989 = int_to_ptr.vmem [resolvable:$true] %s988
      %994 = dma.vmem_to_hbm [thread:$0]  %s989, 1024, %s4, [#allocation6], 64, 64, 4
    $region37: #{tpu_custom_call.1} parent=1 // pred_fallthru
      _
    // Predicated region
    $region38: #{tpu_custom_call.1} parent=1 // pred_check
      _
    $region39: #{tpu_custom_call.1} parent=1 // pred_check_branch
      %996 = sbr.rel (0) target = $region41
    $region40: #{tpu_custom_call.1} parent=1 // pred_region
      %s998 = ssub.s32 256, 256
      %999 = vsyncadd [#allocation12], %s998
      %s1000 = sshll.u32 [#allocation11], 4
      %s1001 = int_to_ptr.vmem [resolvable:$true] %s1000
      %1006 = dma.vmem_to_hbm [thread:$0]  %s1001, 256, %s5, [#allocation12], 128, 128, 8
    $region41: #{tpu_custom_call.1} parent=1 // pred_fallthru
      _
    // Predicated region
    $region42: #{tpu_custom_call.1} parent=1 // pred_check
      _
    $region43: #{tpu_custom_call.1} parent=1 // pred_check_branch
      %1008 = sbr.rel (0) target = $region45
    $region44: #{tpu_custom_call.1} parent=1 // pred_region
      %1009 = dma.done [#allocation6], 1024
    $region45: #{tpu_custom_call.1} parent=1 // pred_fallthru
      _
    // Predicated region
    $region46: #{tpu_custom_call.1} parent=1 // pred_check
      _
    $region47: #{tpu_custom_call.1} parent=1 // pred_check_branch
      %1011 = sbr.rel (0) target = $region49
    $region48: #{tpu_custom_call.1} parent=1 // pred_region
      %1012 = dma.done [#allocation12], 256
    $region49: #{tpu_custom_call.1} parent=1 // pred_fallthru
      _
    %1013 = vsyncpa [#allocation5], 1
    %1014 = vsyncpa [#allocation8], 1
    %1015 = vsyncpa [#allocation6], 1
    %1016 = vsyncpa [#allocation12], 1

</llo_original>
